<compile_context>
chip_gen: v6e
topology: v6e:2x2x1
jax: 0.10.0
libtpu: 0.0.40
codegen_flags: <defaults>
</compile_context>

<pallas_src>
import functools

import jax
import jax.numpy as jnp
from jax import lax
from jax.experimental import pallas as pl
from jax.experimental.pallas import tpu as pltpu


def _attention_kernel(x_ref, wqkv_ref, wout_ref, bout_ref, o_ref, *,
                      heads, dim_head, block_b, kv_tile):
    """block_b batch elements: fused QKV proj + flash MHSA + folded out-proj."""
    inner = heads * dim_head
    n = x_ref.shape[-1]
    num_kv = n // kv_tile

    # --- QKV projection for the whole batch block at once (lane dim = bt*N). ---
    x_all = x_ref[...]                                            # (bt, dim, n) bf16
    if block_b > 1:
        x_cols = jnp.concatenate([x_all[i] for i in range(block_b)], axis=1)
    else:
        x_cols = x_all[0]                                         # (dim, n)
    qkv_all = jnp.dot(wqkv_ref[...], x_cols,
                      preferred_element_type=jnp.float32)         # (3*inner, bt*n)
    qkv_all = qkv_all.astype(jnp.bfloat16)

    for bi in range(block_b):                                     # static unroll
        qkv = qkv_all[:, bi * n:(bi + 1) * n] if block_b > 1 else qkv_all

        y = None
        for h in range(heads):                                    # static unroll
            q = qkv[h * dim_head:(h + 1) * dim_head, :]                          # (d, n)
            k = qkv[inner + h * dim_head:inner + (h + 1) * dim_head, :]
            v = qkv[2 * inner + h * dim_head:2 * inner + (h + 1) * dim_head, :]

            # Flash-style online softmax over K/V tiles: only an (n, kv_tile)
            # score tile is live at a time; normalization is deferred.
            m_i = jnp.full((n, 1), -jnp.inf, jnp.float32)
            l_i = jnp.zeros((n, 1), jnp.float32)
            acc = jnp.zeros((n, dim_head), jnp.float32)
            for t in range(num_kv):                               # static unroll
                k_t = k[:, t * kv_tile:(t + 1) * kv_tile]         # (d, tk)
                v_t = v[:, t * kv_tile:(t + 1) * kv_tile]         # (d, tk)
                # s[i, j] = sum_d q[d, i] * k_t[d, j]; 1/sqrt(d) pre-folded into Wq.
                s = lax.dot_general(q, k_t, (((0,), (0,)), ((), ())),
                                    preferred_element_type=jnp.float32)  # (n, tk)
                m_new = jnp.maximum(m_i, jnp.max(s, axis=-1, keepdims=True))
                alpha = jnp.exp(m_i - m_new)
                p = jnp.exp(s - m_new)                            # f32 softmax math
                l_i = alpha * l_i + jnp.sum(p, axis=-1, keepdims=True)
                # acc[i, d] += sum_j p[i, j] * v_t[d, j]
                acc = alpha * acc + lax.dot_general(
                    p.astype(jnp.bfloat16), v_t, (((1,), (1,)), ((), ())),
                    preferred_element_type=jnp.float32)           # (n, d)
                m_i = m_new

            # Deferred normalization: n EUP reciprocals instead of n^2 divides.
            out_h = (acc * pl.reciprocal(l_i, approx=True)).astype(jnp.bfloat16)

            # Per-head output projection accumulation:
            #   y[c, i] += sum_d Wout_h[c, d] * out_h[i, d]
            y_h = lax.dot_general(wout_ref[h], out_h, (((1,), (1,)), ((), ())),
                                  preferred_element_type=jnp.float32)    # (dim, n)
            y = y_h if y is None else y + y_h

        o_ref[bi] = (y + bout_ref[...]).astype(o_ref.dtype)


def attention_forward(x, wqkv, wout, bconv, bn, *, heads, dim_head,
                      block_b=None, kv_tile=None):
    """x: [B, dim, N] (NCL).
    wqkv:  [3*inner, dim]  -- nn.Linear(dim, 3*inner, bias=False).weight
    wout:  [dim, inner]    -- nn.Conv1d(inner, dim, 1).weight[:, :, 0]
    bconv: [dim]           -- nn.Conv1d bias
    bn: dict(gamma, beta, running_mean, running_var, eps) for BatchNorm1d(dim)
    Returns [B, dim, N].
    """
    x = jnp.asarray(x)
    B, dim, N = x.shape
    inner = heads * dim_head
    assert wqkv.shape == (3 * inner, dim)
    assert wout.shape == (dim, inner)
    assert N % 128 == 0, "N must be a multiple of the TPU lane width (128)"
    scale = float(dim_head) ** -0.5

    # Fold the softmax scale into the q rows of Wqkv (removes N^2 multiplies).
    wqkv_f = jnp.asarray(wqkv, jnp.float32)
    wqkv_f = wqkv_f.at[:inner].multiply(scale)

    # Fold Conv1d bias + eval-mode BatchNorm into the output projection.
    inv_std = 1.0 / jnp.sqrt(jnp.asarray(bn["running_var"], jnp.float32) + bn["eps"])
    s = jnp.asarray(bn["gamma"], jnp.float32) * inv_std                   # (dim,)
    wout_f = s[:, None] * jnp.asarray(wout, jnp.float32)                  # (dim, inner)
    bias_f = (s * (jnp.asarray(bconv, jnp.float32)
                   - jnp.asarray(bn["running_mean"], jnp.float32))
              + jnp.asarray(bn["beta"], jnp.float32)).reshape(dim, 1)     # f32 (dim, 1)

    # bf16 MXU operands; f32 accumulation happens inside the kernel.
    x_bf = x.astype(jnp.bfloat16)
    wqkv_bf = wqkv_f.astype(jnp.bfloat16)                                 # (3*inner, dim)
    wout_bf = wout_f.reshape(dim, heads, dim_head).transpose(1, 0, 2)     # (heads, dim, d)
    wout_bf = wout_bf.astype(jnp.bfloat16)

    # K/V tile size: only an (N, kv_tile) score tile is ever live.
    if kv_tile is None:
        kv_tile = 512 if N % 512 == 0 else (256 if N % 256 == 0 else 128)
    kv_tile = min(kv_tile, N)
    assert N % kv_tile == 0

    # Batch sub-blocking: amortize per-step overhead at small shapes while
    # keeping >= 2 grid steps so both v7x TensorCores get work.
    if block_b is None:
        per_batch = (3 * inner * N * 6 + N * kv_tile * 6
                     + N * dim_head * 4 + 2 * dim * N * 4)
        block_b = max(1, min(B, (8 << 20) // max(per_batch, 1)))
        while block_b > 1 and (B % block_b != 0 or B // block_b < 2):
            block_b -= 1
    assert B % block_b == 0
    grid = (B // block_b,)

    # Explicit VMEM budget: double-buffered x/o blocks + resident weights +
    # in-flight working set, with headroom under v7x's 64 MiB physical cap.
    out_itemsize = jnp.dtype(x.dtype).itemsize
    work = (3 * inner * block_b * N * 6      # qkv (f32 accum + bf16 copy)
            + N * kv_tile * 6                # score tile (f32) + probs (bf16)
            + N * dim_head * 4               # online-softmax accumulator
            + 2 * dim * N * 4)               # y accumulator + slack
    est = (2 * block_b * dim * N * 2                      # x blocks (bf16, 2-buffered)
           + 2 * block_b * dim * N * out_itemsize         # out blocks (2-buffered)
           + 2 * (3 * inner * dim + heads * dim * dim_head) * 2
           + 2 * dim * 4
           + work)
    vmem_limit = int(min(max(2 * est, 32 << 20), 64 << 20))

    kernel = functools.partial(_attention_kernel, heads=heads, dim_head=dim_head,
                               block_b=block_b, kv_tile=kv_tile)

    return pl.pallas_call(
        kernel,
        out_shape=jax.ShapeDtypeStruct((B, dim, N), x.dtype),
        grid=grid,
        in_specs=[
            pl.BlockSpec((block_b, dim, N), lambda b: (b, 0, 0)),         # x block
            pl.BlockSpec((3 * inner, dim), lambda b: (0, 0)),             # Wqkv (resident)
            pl.BlockSpec((heads, dim, dim_head), lambda b: (0, 0, 0)),    # folded Wout
            pl.BlockSpec((dim, 1), lambda b: (0, 0)),                     # folded bias
        ],
        out_specs=pl.BlockSpec((block_b, dim, N), lambda b: (b, 0, 0)),
        compiler_params=pltpu.CompilerParams(
            dimension_semantics=("parallel",),
            vmem_limit_bytes=vmem_limit),
    )(x_bf, wqkv_bf, wout_bf, bias_f)


def _reference(x, wqkv, wout, bconv, bn, *, heads, dim_head):
    """Plain-JAX f32 reference matching the PyTorch forward (eval-mode BN)."""
    B, dim, N = x.shape
    inner = heads * dim_head
    xt = jnp.transpose(x, (0, 2, 1))                              # [B, N, dim]
    qkv = jnp.einsum("bnc,oc->bno", xt, wqkv)                     # [B, N, 3*inner]
    q, k, v = jnp.split(qkv, 3, axis=-1)

    def split_heads(t):                                           # b n (h d) -> b h n d
        return jnp.transpose(t.reshape(B, N, heads, dim_head), (0, 2, 1, 3))

    q, k, v = map(split_heads, (q, k, v))
    dots = jnp.einsum("bhid,bhjd->bhij", q, k) * (dim_head ** -0.5)
    attn = jax.nn.softmax(dots, axis=-1)
    out = jnp.einsum("bhij,bhjd->bhid", attn, v)                  # [B, H, N, d]
    out = jnp.transpose(out, (0, 1, 3, 2)).reshape(B, inner, N)   # b (h d) n
    z = jnp.einsum("oi,bin->bon", wout, out) + bconv[None, :, None]
    inv_std = 1.0 / jnp.sqrt(bn["running_var"] + bn["eps"])
    s = bn["gamma"] * inv_std
    sh = bn["beta"] - bn["running_mean"] * s
    return z * s[None, :, None] + sh[None, :, None]


if __name__ == "__main__":
    # Small shapes consistent with the module: x is [B, dim, N] (NCL).
    B, dim, N = 4, 32, 128
    heads, dim_head = 2, 16
    inner = heads * dim_head

    key = jax.random.PRNGKey(0)
    kx, kq, ko, kb, kg, kbe, km, kv = jax.random.split(key, 8)

    x = jax.random.normal(kx, (B, dim, N), dtype=jnp.float32)
    wqkv = jax.random.normal(kq, (3 * inner, dim), dtype=jnp.float32) * 0.1
    wout = jax.random.normal(ko, (dim, inner), dtype=jnp.float32) * 0.1
    bconv = jax.random.normal(kb, (dim,), dtype=jnp.float32) * 0.1
    bn = dict(gamma=1.0 + 0.1 * jax.random.normal(kg, (dim,)),
              beta=0.1 * jax.random.normal(kbe, (dim,)),
              running_mean=0.1 * jax.random.normal(km, (dim,)),
              running_var=jnp.abs(1.0 + 0.1 * jax.random.normal(kv, (dim,))),
              eps=1e-5)

    out = attention_forward(x, wqkv, wout, bconv, bn,
                            heads=heads, dim_head=dim_head)
    out = jax.block_until_ready(out)

    ref = _reference(x, wqkv, wout, bconv, bn, heads=heads, dim_head=dim_head)
    assert out.shape == (B, dim, N)
    # bf16 MXU operands -> relaxed tolerance vs. the f32 reference (expected).
    max_err = jnp.max(jnp.abs(out.astype(jnp.float32) - ref))
    assert jnp.allclose(out.astype(jnp.float32), ref, atol=3e-2, rtol=3e-2), (
        f"mismatch vs reference: max abs diff = {max_err}")

    print("KERNEL_OK")
</pallas_src>

<mosaic_0001>
module attributes {stable_mosaic.version = 11 : i64} {
  func.func @_attention_kernel(%arg0: i32, %arg1: memref<2x32x128xbf16, #tpu.memory_space<vmem>>, %arg2: memref<96x32xbf16, #tpu.memory_space<vmem>>, %arg3: memref<2x32x16xbf16, #tpu.memory_space<vmem>>, %arg4: memref<32x1xf32, #tpu.memory_space<vmem>>, %arg5: memref<2x32x128xf32, #tpu.memory_space<vmem>>) attributes {dimension_semantics = [#tpu.dimension_semantics<parallel>], iteration_bounds = array<i64: 2>, scalar_prefetch = 0 : i64, scratch_operands = 0 : i64, tpu.core_type = #tpu.core_type<tc>, window_params = [{transform_indices = @transform_0, window_bounds = array<i64: 2, 32, 128>}, {pipeline_mode = #tpu.pipeline_mode<synchronous>, transform_indices = @transform_1, window_bounds = array<i64: 96, 32>}, {pipeline_mode = #tpu.pipeline_mode<synchronous>, transform_indices = @transform_2, window_bounds = array<i64: 2, 32, 16>}, {pipeline_mode = #tpu.pipeline_mode<synchronous>, transform_indices = @transform_3, window_bounds = array<i64: 32, 1>}, {transform_indices = @transform_4, window_bounds = array<i64: 2, 32, 128>}]} {
    %c0 = arith.constant 0 : index
    %c0_0 = arith.constant 0 : index
    %c0_1 = arith.constant 0 : index
    %0 = vector.load %arg1[%c0, %c0_0, %c0_1] : memref<2x32x128xbf16, #tpu.memory_space<vmem>>, vector<2x32x128xbf16>
    %1 = vector.extract_strided_slice %0 {offsets = [0, 0, 0], sizes = [1, 32, 128], strides = [1, 1, 1]} : vector<2x32x128xbf16> to vector<1x32x128xbf16>
    %2 = vector.shape_cast %1 : vector<1x32x128xbf16> to vector<32x128xbf16>
    %3 = vector.extract_strided_slice %0 {offsets = [1, 0, 0], sizes = [1, 32, 128], strides = [1, 1, 1]} : vector<2x32x128xbf16> to vector<1x32x128xbf16>
    %4 = vector.shape_cast %3 : vector<1x32x128xbf16> to vector<32x128xbf16>
    %5 = tpu.concatenate %2, %4 in 1 : vector<32x128xbf16>, vector<32x128xbf16> -> vector<32x256xbf16>
    %c0_2 = arith.constant 0 : index
    %c0_3 = arith.constant 0 : index
    %6 = vector.load %arg2[%c0_2, %c0_3] : memref<96x32xbf16, #tpu.memory_space<vmem>>, vector<96x32xbf16>
    %cst = arith.constant dense<0.000000e+00> : vector<96x256xf32>
    %7 = tpu.matmul %6, %5, %cst {dimension_numbers = #tpu.dot_dimension_numbers<[1], [0], [0], [1], [0, 0, 1, 1], [], []>} : vector<96x32xbf16>, vector<32x256xbf16>, vector<96x256xf32> -> vector<96x256xf32>
    %8 = arith.truncf %7 : vector<96x256xf32> to vector<96x256xbf16>
    %9 = vector.extract_strided_slice %8 {offsets = [0, 0], sizes = [96, 128], strides = [1, 1]} : vector<96x256xbf16> to vector<96x128xbf16>
    %10 = vector.extract_strided_slice %9 {offsets = [0, 0], sizes = [16, 128], strides = [1, 1]} : vector<96x128xbf16> to vector<16x128xbf16>
    %11 = vector.extract_strided_slice %9 {offsets = [32, 0], sizes = [16, 128], strides = [1, 1]} : vector<96x128xbf16> to vector<16x128xbf16>
    %12 = vector.extract_strided_slice %9 {offsets = [64, 0], sizes = [16, 128], strides = [1, 1]} : vector<96x128xbf16> to vector<16x128xbf16>
    %cst_4 = arith.constant 0xFF800000 : f32
    %13 = vector.broadcast %cst_4 : f32 to vector<128x1xf32>
    %cst_5 = arith.constant 0.000000e+00 : f32
    %14 = vector.broadcast %cst_5 : f32 to vector<128x1xf32>
    %cst_6 = arith.constant 0.000000e+00 : f32
    %15 = vector.broadcast %cst_6 : f32 to vector<128x16xf32>
    %cst_7 = arith.constant dense<0.000000e+00> : vector<128x128xf32>
    %16 = tpu.matmul %10, %11, %cst_7 {dimension_numbers = #tpu.dot_dimension_numbers<[0], [0], [1], [1], [0, 1, 1, 1], [], []>} : vector<16x128xbf16>, vector<16x128xbf16>, vector<128x128xf32> -> vector<128x128xf32>
    %cst_8 = arith.constant dense<0xFF800000> : vector<128xf32>
    %17 = vector.multi_reduction <maximumf>, %16, %cst_8 [1] : vector<128x128xf32> to vector<128xf32>
    %18 = vector.shape_cast %17 : vector<128xf32> to vector<128x1xf32>
    %19 = arith.maximumf %13, %18 : vector<128x1xf32>
    %20 = arith.subf %13, %19 : vector<128x1xf32>
    %21 = math.exp %20 : vector<128x1xf32>
    %22 = vector.broadcast %19 : vector<128x1xf32> to vector<128x128xf32>
    %23 = arith.subf %16, %22 : vector<128x128xf32>
    %24 = math.exp %23 : vector<128x128xf32>
    %25 = arith.mulf %21, %14 : vector<128x1xf32>
    %cst_9 = arith.constant dense<0.000000e+00> : vector<128xf32>
    %26 = vector.multi_reduction <add>, %24, %cst_9 [1] : vector<128x128xf32> to vector<128xf32>
    %27 = vector.shape_cast %26 : vector<128xf32> to vector<128x1xf32>
    %28 = arith.addf %25, %27 : vector<128x1xf32>
    %29 = vector.broadcast %21 : vector<128x1xf32> to vector<128x16xf32>
    %30 = arith.mulf %29, %15 : vector<128x16xf32>
    %31 = arith.truncf %24 : vector<128x128xf32> to vector<128x128xbf16>
    %cst_10 = arith.constant dense<0.000000e+00> : vector<128x16xf32>
    %32 = tpu.matmul %31, %12, %cst_10 {dimension_numbers = #tpu.dot_dimension_numbers<[1], [1], [0], [0], [0, 0, 1, 0], [], []>} : vector<128x128xbf16>, vector<16x128xbf16>, vector<128x16xf32> -> vector<128x16xf32>
    %33 = arith.addf %30, %32 : vector<128x16xf32>
    %34 = tpu.reciprocal %28 {approx = true} : vector<128x1xf32> -> vector<128x1xf32>
    %35 = vector.broadcast %34 : vector<128x1xf32> to vector<128x16xf32>
    %36 = arith.mulf %33, %35 : vector<128x16xf32>
    %37 = arith.truncf %36 : vector<128x16xf32> to vector<128x16xbf16>
    %c0_11 = arith.constant 0 : index
    %c0_12 = arith.constant 0 : index
    %c0_13 = arith.constant 0 : index
    %38 = vector.load %arg3[%c0_11, %c0_12, %c0_13] : memref<2x32x16xbf16, #tpu.memory_space<vmem>>, vector<1x32x16xbf16>
    %39 = vector.shape_cast %38 : vector<1x32x16xbf16> to vector<32x16xbf16>
    %cst_14 = arith.constant dense<0.000000e+00> : vector<32x128xf32>
    %40 = tpu.matmul %39, %37, %cst_14 {dimension_numbers = #tpu.dot_dimension_numbers<[1], [1], [0], [0], [0, 0, 1, 0], [], []>} : vector<32x16xbf16>, vector<128x16xbf16>, vector<32x128xf32> -> vector<32x128xf32>
    %41 = vector.extract_strided_slice %9 {offsets = [16, 0], sizes = [16, 128], strides = [1, 1]} : vector<96x128xbf16> to vector<16x128xbf16>
    %42 = vector.extract_strided_slice %9 {offsets = [48, 0], sizes = [16, 128], strides = [1, 1]} : vector<96x128xbf16> to vector<16x128xbf16>
    %43 = vector.extract_strided_slice %9 {offsets = [80, 0], sizes = [16, 128], strides = [1, 1]} : vector<96x128xbf16> to vector<16x128xbf16>
    %cst_15 = arith.constant 0xFF800000 : f32
    %44 = vector.broadcast %cst_15 : f32 to vector<128x1xf32>
    %cst_16 = arith.constant 0.000000e+00 : f32
    %45 = vector.broadcast %cst_16 : f32 to vector<128x1xf32>
    %cst_17 = arith.constant 0.000000e+00 : f32
    %46 = vector.broadcast %cst_17 : f32 to vector<128x16xf32>
    %cst_18 = arith.constant dense<0.000000e+00> : vector<128x128xf32>
    %47 = tpu.matmul %41, %42, %cst_18 {dimension_numbers = #tpu.dot_dimension_numbers<[0], [0], [1], [1], [0, 1, 1, 1], [], []>} : vector<16x128xbf16>, vector<16x128xbf16>, vector<128x128xf32> -> vector<128x128xf32>
    %cst_19 = arith.constant dense<0xFF800000> : vector<128xf32>
    %48 = vector.multi_reduction <maximumf>, %47, %cst_19 [1] : vector<128x128xf32> to vector<128xf32>
    %49 = vector.shape_cast %48 : vector<128xf32> to vector<128x1xf32>
    %50 = arith.maximumf %44, %49 : vector<128x1xf32>
    %51 = arith.subf %44, %50 : vector<128x1xf32>
    %52 = math.exp %51 : vector<128x1xf32>
    %53 = vector.broadcast %50 : vector<128x1xf32> to vector<128x128xf32>
    %54 = arith.subf %47, %53 : vector<128x128xf32>
    %55 = math.exp %54 : vector<128x128xf32>
    %56 = arith.mulf %52, %45 : vector<128x1xf32>
    %cst_20 = arith.constant dense<0.000000e+00> : vector<128xf32>
    %57 = vector.multi_reduction <add>, %55, %cst_20 [1] : vector<128x128xf32> to vector<128xf32>
    %58 = vector.shape_cast %57 : vector<128xf32> to vector<128x1xf32>
    %59 = arith.addf %56, %58 : vector<128x1xf32>
    %60 = vector.broadcast %52 : vector<128x1xf32> to vector<128x16xf32>
    %61 = arith.mulf %60, %46 : vector<128x16xf32>
    %62 = arith.truncf %55 : vector<128x128xf32> to vector<128x128xbf16>
    %cst_21 = arith.constant dense<0.000000e+00> : vector<128x16xf32>
    %63 = tpu.matmul %62, %43, %cst_21 {dimension_numbers = #tpu.dot_dimension_numbers<[1], [1], [0], [0], [0, 0, 1, 0], [], []>} : vector<128x128xbf16>, vector<16x128xbf16>, vector<128x16xf32> -> vector<128x16xf32>
    %64 = arith.addf %61, %63 : vector<128x16xf32>
    %65 = tpu.reciprocal %59 {approx = true} : vector<128x1xf32> -> vector<128x1xf32>
    %66 = vector.broadcast %65 : vector<128x1xf32> to vector<128x16xf32>
    %67 = arith.mulf %64, %66 : vector<128x16xf32>
    %68 = arith.truncf %67 : vector<128x16xf32> to vector<128x16xbf16>
    %c1 = arith.constant 1 : index
    %c0_22 = arith.constant 0 : index
    %c0_23 = arith.constant 0 : index
    %69 = vector.load %arg3[%c1, %c0_22, %c0_23] : memref<2x32x16xbf16, #tpu.memory_space<vmem>>, vector<1x32x16xbf16>
    %70 = vector.shape_cast %69 : vector<1x32x16xbf16> to vector<32x16xbf16>
    %cst_24 = arith.constant dense<0.000000e+00> : vector<32x128xf32>
    %71 = tpu.matmul %70, %68, %cst_24 {dimension_numbers = #tpu.dot_dimension_numbers<[1], [1], [0], [0], [0, 0, 1, 0], [], []>} : vector<32x16xbf16>, vector<128x16xbf16>, vector<32x128xf32> -> vector<32x128xf32>
    %72 = arith.addf %40, %71 : vector<32x128xf32>
    %c0_25 = arith.constant 0 : index
    %c0_26 = arith.constant 0 : index
    %73 = vector.load %arg4[%c0_25, %c0_26] : memref<32x1xf32, #tpu.memory_space<vmem>>, vector<32x1xf32>
    %74 = vector.broadcast %73 : vector<32x1xf32> to vector<32x128xf32>
    %75 = arith.addf %72, %74 : vector<32x128xf32>
    %c0_27 = arith.constant 0 : index
    %c0_28 = arith.constant 0 : index
    %c0_29 = arith.constant 0 : index
    %76 = vector.load %arg5[%c0_27, %c0_28, %c0_29] : memref<2x32x128xf32, #tpu.memory_space<vmem>>, vector<1x32x128xf32>
    %77 = vector.shape_cast %76 : vector<1x32x128xf32> to vector<32x128xf32>
    %78 = vector.shape_cast %75 : vector<32x128xf32> to vector<1x32x128xf32>
    tpu.vector_store %arg5[%c0_27, %c0_28, %c0_29], %78 {strides = array<i32>} : memref<2x32x128xf32, #tpu.memory_space<vmem>>, vector<1x32x128xf32>,
    %79 = vector.extract_strided_slice %8 {offsets = [0, 128], sizes = [96, 128], strides = [1, 1]} : vector<96x256xbf16> to vector<96x128xbf16>
    %80 = vector.extract_strided_slice %79 {offsets = [0, 0], sizes = [16, 128], strides = [1, 1]} : vector<96x128xbf16> to vector<16x128xbf16>
    %81 = vector.extract_strided_slice %79 {offsets = [32, 0], sizes = [16, 128], strides = [1, 1]} : vector<96x128xbf16> to vector<16x128xbf16>
    %82 = vector.extract_strided_slice %79 {offsets = [64, 0], sizes = [16, 128], strides = [1, 1]} : vector<96x128xbf16> to vector<16x128xbf16>
    %cst_30 = arith.constant 0xFF800000 : f32
    %83 = vector.broadcast %cst_30 : f32 to vector<128x1xf32>
    %cst_31 = arith.constant 0.000000e+00 : f32
    %84 = vector.broadcast %cst_31 : f32 to vector<128x1xf32>
    %cst_32 = arith.constant 0.000000e+00 : f32
    %85 = vector.broadcast %cst_32 : f32 to vector<128x16xf32>
    %cst_33 = arith.constant dense<0.000000e+00> : vector<128x128xf32>
    %86 = tpu.matmul %80, %81, %cst_33 {dimension_numbers = #tpu.dot_dimension_numbers<[0], [0], [1], [1], [0, 1, 1, 1], [], []>} : vector<16x128xbf16>, vector<16x128xbf16>, vector<128x128xf32> -> vector<128x128xf32>
    %cst_34 = arith.constant dense<0xFF800000> : vector<128xf32>
    %87 = vector.multi_reduction <maximumf>, %86, %cst_34 [1] : vector<128x128xf32> to vector<128xf32>
    %88 = vector.shape_cast %87 : vector<128xf32> to vector<128x1xf32>
    %89 = arith.maximumf %83, %88 : vector<128x1xf32>
    %90 = arith.subf %83, %89 : vector<128x1xf32>
    %91 = math.exp %90 : vector<128x1xf32>
    %92 = vector.broadcast %89 : vector<128x1xf32> to vector<128x128xf32>
    %93 = arith.subf %86, %92 : vector<128x128xf32>
    %94 = math.exp %93 : vector<128x128xf32>
    %95 = arith.mulf %91, %84 : vector<128x1xf32>
    %cst_35 = arith.constant dense<0.000000e+00> : vector<128xf32>
    %96 = vector.multi_reduction <add>, %94, %cst_35 [1] : vector<128x128xf32> to vector<128xf32>
    %97 = vector.shape_cast %96 : vector<128xf32> to vector<128x1xf32>
    %98 = arith.addf %95, %97 : vector<128x1xf32>
    %99 = vector.broadcast %91 : vector<128x1xf32> to vector<128x16xf32>
    %100 = arith.mulf %99, %85 : vector<128x16xf32>
    %101 = arith.truncf %94 : vector<128x128xf32> to vector<128x128xbf16>
    %cst_36 = arith.constant dense<0.000000e+00> : vector<128x16xf32>
    %102 = tpu.matmul %101, %82, %cst_36 {dimension_numbers = #tpu.dot_dimension_numbers<[1], [1], [0], [0], [0, 0, 1, 0], [], []>} : vector<128x128xbf16>, vector<16x128xbf16>, vector<128x16xf32> -> vector<128x16xf32>
    %103 = arith.addf %100, %102 : vector<128x16xf32>
    %104 = tpu.reciprocal %98 {approx = true} : vector<128x1xf32> -> vector<128x1xf32>
    %105 = vector.broadcast %104 : vector<128x1xf32> to vector<128x16xf32>
    %106 = arith.mulf %103, %105 : vector<128x16xf32>
    %107 = arith.truncf %106 : vector<128x16xf32> to vector<128x16xbf16>
    %c0_37 = arith.constant 0 : index
    %c0_38 = arith.constant 0 : index
    %c0_39 = arith.constant 0 : index
    %108 = vector.load %arg3[%c0_37, %c0_38, %c0_39] : memref<2x32x16xbf16, #tpu.memory_space<vmem>>, vector<1x32x16xbf16>
    %109 = vector.shape_cast %108 : vector<1x32x16xbf16> to vector<32x16xbf16>
    %cst_40 = arith.constant dense<0.000000e+00> : vector<32x128xf32>
    %110 = tpu.matmul %109, %107, %cst_40 {dimension_numbers = #tpu.dot_dimension_numbers<[1], [1], [0], [0], [0, 0, 1, 0], [], []>} : vector<32x16xbf16>, vector<128x16xbf16>, vector<32x128xf32> -> vector<32x128xf32>
    %111 = vector.extract_strided_slice %79 {offsets = [16, 0], sizes = [16, 128], strides = [1, 1]} : vector<96x128xbf16> to vector<16x128xbf16>
    %112 = vector.extract_strided_slice %79 {offsets = [48, 0], sizes = [16, 128], strides = [1, 1]} : vector<96x128xbf16> to vector<16x128xbf16>
    %113 = vector.extract_strided_slice %79 {offsets = [80, 0], sizes = [16, 128], strides = [1, 1]} : vector<96x128xbf16> to vector<16x128xbf16>
    %cst_41 = arith.constant 0xFF800000 : f32
    %114 = vector.broadcast %cst_41 : f32 to vector<128x1xf32>
    %cst_42 = arith.constant 0.000000e+00 : f32
    %115 = vector.broadcast %cst_42 : f32 to vector<128x1xf32>
    %cst_43 = arith.constant 0.000000e+00 : f32
    %116 = vector.broadcast %cst_43 : f32 to vector<128x16xf32>
    %cst_44 = arith.constant dense<0.000000e+00> : vector<128x128xf32>
    %117 = tpu.matmul %111, %112, %cst_44 {dimension_numbers = #tpu.dot_dimension_numbers<[0], [0], [1], [1], [0, 1, 1, 1], [], []>} : vector<16x128xbf16>, vector<16x128xbf16>, vector<128x128xf32> -> vector<128x128xf32>
    %cst_45 = arith.constant dense<0xFF800000> : vector<128xf32>
    %118 = vector.multi_reduction <maximumf>, %117, %cst_45 [1] : vector<128x128xf32> to vector<128xf32>
    %119 = vector.shape_cast %118 : vector<128xf32> to vector<128x1xf32>
    %120 = arith.maximumf %114, %119 : vector<128x1xf32>
    %121 = arith.subf %114, %120 : vector<128x1xf32>
    %122 = math.exp %121 : vector<128x1xf32>
    %123 = vector.broadcast %120 : vector<128x1xf32> to vector<128x128xf32>
    %124 = arith.subf %117, %123 : vector<128x128xf32>
    %125 = math.exp %124 : vector<128x128xf32>
    %126 = arith.mulf %122, %115 : vector<128x1xf32>
    %cst_46 = arith.constant dense<0.000000e+00> : vector<128xf32>
    %127 = vector.multi_reduction <add>, %125, %cst_46 [1] : vector<128x128xf32> to vector<128xf32>
    %128 = vector.shape_cast %127 : vector<128xf32> to vector<128x1xf32>
    %129 = arith.addf %126, %128 : vector<128x1xf32>
    %130 = vector.broadcast %122 : vector<128x1xf32> to vector<128x16xf32>
    %131 = arith.mulf %130, %116 : vector<128x16xf32>
    %132 = arith.truncf %125 : vector<128x128xf32> to vector<128x128xbf16>
    %cst_47 = arith.constant dense<0.000000e+00> : vector<128x16xf32>
    %133 = tpu.matmul %132, %113, %cst_47 {dimension_numbers = #tpu.dot_dimension_numbers<[1], [1], [0], [0], [0, 0, 1, 0], [], []>} : vector<128x128xbf16>, vector<16x128xbf16>, vector<128x16xf32> -> vector<128x16xf32>
    %134 = arith.addf %131, %133 : vector<128x16xf32>
    %135 = tpu.reciprocal %129 {approx = true} : vector<128x1xf32> -> vector<128x1xf32>
    %136 = vector.broadcast %135 : vector<128x1xf32> to vector<128x16xf32>
    %137 = arith.mulf %134, %136 : vector<128x16xf32>
    %138 = arith.truncf %137 : vector<128x16xf32> to vector<128x16xbf16>
    %c1_48 = arith.constant 1 : index
    %c0_49 = arith.constant 0 : index
    %c0_50 = arith.constant 0 : index
    %139 = vector.load %arg3[%c1_48, %c0_49, %c0_50] : memref<2x32x16xbf16, #tpu.memory_space<vmem>>, vector<1x32x16xbf16>
    %140 = vector.shape_cast %139 : vector<1x32x16xbf16> to vector<32x16xbf16>
    %cst_51 = arith.constant dense<0.000000e+00> : vector<32x128xf32>
    %141 = tpu.matmul %140, %138, %cst_51 {dimension_numbers = #tpu.dot_dimension_numbers<[1], [1], [0], [0], [0, 0, 1, 0], [], []>} : vector<32x16xbf16>, vector<128x16xbf16>, vector<32x128xf32> -> vector<32x128xf32>
    %142 = arith.addf %110, %141 : vector<32x128xf32>
    %c0_52 = arith.constant 0 : index
    %c0_53 = arith.constant 0 : index
    %143 = vector.load %arg4[%c0_52, %c0_53] : memref<32x1xf32, #tpu.memory_space<vmem>>, vector<32x1xf32>
    %144 = vector.broadcast %143 : vector<32x1xf32> to vector<32x128xf32>
    %145 = arith.addf %142, %144 : vector<32x128xf32>
    %c1_54 = arith.constant 1 : index
    %c0_55 = arith.constant 0 : index
    %c0_56 = arith.constant 0 : index
    %146 = vector.load %arg5[%c1_54, %c0_55, %c0_56] : memref<2x32x128xf32, #tpu.memory_space<vmem>>, vector<1x32x128xf32>
    %147 = vector.shape_cast %146 : vector<1x32x128xf32> to vector<32x128xf32>
    %148 = vector.shape_cast %145 : vector<32x128xf32> to vector<1x32x128xf32>
    tpu.vector_store %arg5[%c1_54, %c0_55, %c0_56], %148 {strides = array<i32>} : memref<2x32x128xf32, #tpu.memory_space<vmem>>, vector<1x32x128xf32>,
    return
  }
  func.func @transform_0(%arg0: i32) -> (i32, i32, i32) {
    %c0_i32 = arith.constant 0 : i32
    %c0_i32_0 = arith.constant 0 : i32
    %c0_i32_1 = arith.constant 0 : i32
    return %arg0, %c0_i32, %c0_i32_0 : i32, i32, i32
  }
  func.func @transform_1(%arg0: i32) -> (i32, i32) {
    %c0_i32 = arith.constant 0 : i32
    %c0_i32_0 = arith.constant 0 : i32
    %c0_i32_1 = arith.constant 0 : i32
    return %c0_i32, %c0_i32_0 : i32, i32
  }
  func.func @transform_2(%arg0: i32) -> (i32, i32, i32) {
    %c0_i32 = arith.constant 0 : i32
    %c0_i32_0 = arith.constant 0 : i32
    %c0_i32_1 = arith.constant 0 : i32
    %c0_i32_2 = arith.constant 0 : i32
    return %c0_i32, %c0_i32_0, %c0_i32_1 : i32, i32, i32
  }
  func.func @transform_3(%arg0: i32) -> (i32, i32) {
    %c0_i32 = arith.constant 0 : i32
    %c0_i32_0 = arith.constant 0 : i32
    %c0_i32_1 = arith.constant 0 : i32
    return %c0_i32, %c0_i32_0 : i32, i32
  }
  func.func @transform_4(%arg0: i32) -> (i32, i32, i32) {
    %c0_i32 = arith.constant 0 : i32
    %c0_i32_0 = arith.constant 0 : i32
    %c0_i32_1 = arith.constant 0 : i32
    return %arg0, %c0_i32, %c0_i32_0 : i32, i32, i32
  }
}

</mosaic_0001>

<llo_original>
// kernel: tpu_custom_call.1
$region0: #{tpu_custom_call.1}
  #allocation0 [shape = 'u32[]', space=smem, size = 0x4, offset = 0x4, fixed_abs, tag = 'smem constant byte address 0x4 - core index']
  #allocation1 [shape = 'u32[144,128]{1,0:T(1,128)}', space=vmem, size = 0x12000, scoped, tag = 'internal scratch']
  %s0 = inlined_call_operand.vmem [shape: bf16[4,32,128], index: 0, kind: input, shape index: {}]
  %s1 = inlined_call_operand.vmem [shape: bf16[96,32], index: 1, kind: input, shape index: {}]
  %s2 = inlined_call_operand.vmem [shape: bf16[2,32,16], index: 2, kind: input, shape index: {}]
  %s3 = inlined_call_operand.vmem [shape: f32[32,1], index: 3, kind: input, shape index: {}]
  %s4 = inlined_call_operand.hbm [shape: f32[4,32,128], index: 4, kind: output, shape index: {}]
  %s5 = sld [smem:[#allocation0]]
  $region49: #{tpu_custom_call.1} parent=0
    _
  %s7 = ssub.s32 1, %s5
  %s8 = scalar_select 0, %s7, %s5
  $region1: #{tpu_custom_call.1} parent=0
    #allocation2 [shape = 'u8[65536]{0}', space=vmem, size = 0x10000, scoped, tag = 'output window, operand 0']
    #allocation3 [shape = 's32[2]{0}', space=sflag, size = 0x8, scoped, tag = 'scoped memory for tpu_custom_call.1']
    %9 = vsyncpa [#allocation3], 0
    %s10 = scalar_lea.sflag [#allocation3], 1
    %11 = vsyncpa %s10, 0
    loop: start=0, step=1, limit=4
    $region2: #{tpu_custom_call.1} parent=1 // loop_pre_header
      _
    $region3: #{tpu_custom_call.1} parent=1 // loop_header
      %s13 = sphi 0, %s17
      %p14 = scmp.ge.s32.totalorder %s13, 4
      %s23 = sphi 0, %s25
      %s26 = sphi 0, %s23
      %s27 = sphi 0, %s26
      %s43 = sphi 0, %s27
      %s47 = sphi 0, %s47
      %s49 = sphi 0, %s47
      %s50 = sphi 0, %s49
      %s64 = sphi 0, %s50
      %s68 = sphi 0, %s68
      %s70 = sphi 0, %s68
      %s71 = sphi 0, %s70
      %s85 = sphi 0, %s71
      %s89 = sphi 0, %s89
      %s91 = sphi 0, %s89
      %s92 = sphi 0, %s91
      %s106 = sphi 0, %s92
      %s112 = sphi 0, %s114
      %s115 = sphi 0, %s112
      %s116 = sphi 0, %s115
      %s132 = sphi 0, %s116
    $region4: #{tpu_custom_call.1} parent=1 // loop_header_branch
      %16 = sbr.rel (%p14) target = $region8
    $region5: #{tpu_custom_call.1} parent=1 // loop_body
      %s18 = ssub.s32 %s13, 1
      %s19 = ssub.s32 %s13, 2
      %s20 = sadd.s32 %s13, 1
      %s21 = ssub.s32 %s13, %s20
      %p22 = scmp.eq.s32.totalorder %s21, 0
      %s24 = sadd.s32 %s23, 1
      %s25 = scalar_select %p22, %s23, %s24
      %p28 = pneg %p22
      %p29 = scmp.eq.s32.totalorder %s13, 1
      %p30 = por %p28, %p29
      %p31 = scmp.ne.s32.totalorder %s23, %s26
      %p32 = scmp.eq.s32.totalorder %s13, 0
      %p33 = por %p31, %p32
      %p34 = scmp.ne.s32.totalorder %s23, %s26
      %p35 = scmp.eq.s32.totalorder %s18, 1
      %p36 = por %p34, %p35
      %p37 = scmp.ne.s32.totalorder %s26, %s27
      %p38 = scmp.eq.s32.totalorder %s18, 0
      %p39 = por %p37, %p38
      %p40 = scmp.ne.s32.totalorder %s26, %s27
      %p41 = scmp.eq.s32.totalorder %s19, 1
      %p42 = por %p40, %p41
      %p44 = scmp.ne.s32.totalorder %s27, %s43
      %p45 = scmp.eq.s32.totalorder %s19, 0
      %p46 = por %p44, %p45
      %s48 = sadd.s32 %s47, 1
      %p51 = scmp.eq.s32.totalorder %s13, 1
      %p52 = scmp.ne.s32.totalorder %s47, %s49
      %p53 = scmp.eq.s32.totalorder %s13, 0
      %p54 = por %p52, %p53
      %p55 = scmp.ne.s32.totalorder %s47, %s49
      %p56 = scmp.eq.s32.totalorder %s18, 1
      %p57 = por %p55, %p56
      %p58 = scmp.ne.s32.totalorder %s49, %s50
      %p59 = scmp.eq.s32.totalorder %s18, 0
      %p60 = por %p58, %p59
      %p61 = scmp.ne.s32.totalorder %s49, %s50
      %p62 = scmp.eq.s32.totalorder %s19, 1
      %p63 = por %p61, %p62
      %p65 = scmp.ne.s32.totalorder %s50, %s64
      %p66 = scmp.eq.s32.totalorder %s19, 0
      %p67 = por %p65, %p66
      %s69 = sadd.s32 %s68, 1
      %p72 = scmp.eq.s32.totalorder %s13, 1
      %p73 = scmp.ne.s32.totalorder %s68, %s70
      %p74 = scmp.eq.s32.totalorder %s13, 0
      %p75 = por %p73, %p74
      %p76 = scmp.ne.s32.totalorder %s68, %s70
      %p77 = scmp.eq.s32.totalorder %s18, 1
      %p78 = por %p76, %p77
      %p79 = scmp.ne.s32.totalorder %s70, %s71
      %p80 = scmp.eq.s32.totalorder %s18, 0
      %p81 = por %p79, %p80
      %p82 = scmp.ne.s32.totalorder %s70, %s71
      %p83 = scmp.eq.s32.totalorder %s19, 1
      %p84 = por %p82, %p83
      %p86 = scmp.ne.s32.totalorder %s71, %s85
      %p87 = scmp.eq.s32.totalorder %s19, 0
      %p88 = por %p86, %p87
      %s90 = sadd.s32 %s89, 1
      %p93 = scmp.eq.s32.totalorder %s13, 1
      %p94 = scmp.ne.s32.totalorder %s89, %s91
      %p95 = scmp.eq.s32.totalorder %s13, 0
      %p96 = por %p94, %p95
      %p97 = scmp.ne.s32.totalorder %s89, %s91
      %p98 = scmp.eq.s32.totalorder %s18, 1
      %p99 = por %p97, %p98
      %p100 = scmp.ne.s32.totalorder %s91, %s92
      %p101 = scmp.eq.s32.totalorder %s18, 0
      %p102 = por %p100, %p101
      %p103 = scmp.ne.s32.totalorder %s91, %s92
      %p104 = scmp.eq.s32.totalorder %s19, 1
      %p105 = por %p103, %p104
      %p107 = scmp.ne.s32.totalorder %s92, %s106
      %p108 = scmp.eq.s32.totalorder %s19, 0
      %p109 = por %p107, %p108
      %s110 = ssub.s32 %s13, %s20
      %p111 = scmp.eq.s32.totalorder %s110, 0
      %s113 = sadd.s32 %s112, 1
      %s114 = scalar_select %p111, %s112, %s113
      %p117 = pneg %p111
      %p118 = scmp.eq.s32.totalorder %s13, 1
      %p119 = por %p117, %p118
      %p120 = scmp.ne.s32.totalorder %s112, %s115
      %p121 = scmp.eq.s32.totalorder %s13, 0
      %p122 = por %p120, %p121
      %p123 = scmp.ne.s32.totalorder %s112, %s115
      %p124 = scmp.eq.s32.totalorder %s18, 1
      %p125 = por %p123, %p124
      %p126 = scmp.ne.s32.totalorder %s115, %s116
      %p127 = scmp.eq.s32.totalorder %s18, 0
      %p128 = por %p126, %p127
      %p129 = scmp.ne.s32.totalorder %s115, %s116
      %p130 = scmp.eq.s32.totalorder %s19, 1
      %p131 = por %p129, %p130
      %p133 = scmp.ne.s32.totalorder %s116, %s132
      %p134 = scmp.eq.s32.totalorder %s19, 0
      %p135 = por %p133, %p134
      %p136 = scmp.le.s32.totalorder 1, %s13
      %p137 = scmp.lt.s32.totalorder %s13, 3
      %p138 = pnand %p136, %p137
      %p139 = pneg %p138
      // Predicated region
      $region9: #{tpu_custom_call.1} parent=5 // pred_check
        _
      $region10: #{tpu_custom_call.1} parent=5 // pred_check_branch
        %141 = sbr.rel (%p138) target = $region12
      $region11: #{tpu_custom_call.1} parent=5 // pred_region
        %s142 = ssub.s32 %s13, 1
        // Predicated region
        $region13: #{tpu_custom_call.1} parent=11 // pred_check
          %p143 = pneg %p60
        $region14: #{tpu_custom_call.1} parent=11 // pred_check_branch
          %145 = sbr.rel (%p143) target = $region16
        $region15: #{tpu_custom_call.1} parent=11 // pred_region
          _
        $region16: #{tpu_custom_call.1} parent=11 // pred_fallthru
          _
        // Predicated region
        $region17: #{tpu_custom_call.1} parent=11 // pred_check
          %p146 = pneg %p81
        $region18: #{tpu_custom_call.1} parent=11 // pred_check_branch
          %148 = sbr.rel (%p146) target = $region20
        $region19: #{tpu_custom_call.1} parent=11 // pred_region
          _
        $region20: #{tpu_custom_call.1} parent=11 // pred_fallthru
          _
        // Predicated region
        $region21: #{tpu_custom_call.1} parent=11 // pred_check
          %p149 = pneg %p102
        $region22: #{tpu_custom_call.1} parent=11 // pred_check_branch
          %151 = sbr.rel (%p149) target = $region24
        $region23: #{tpu_custom_call.1} parent=11 // pred_region
          _
        $region24: #{tpu_custom_call.1} parent=11 // pred_fallthru
          _
      $region12: #{tpu_custom_call.1} parent=5 // pred_fallthru
        _
      %p152 = scmp.lt.s32.totalorder %s13, 2
      // Predicated region
      $region25: #{tpu_custom_call.1} parent=5 // pred_check
        %p153 = pneg %p152
      $region26: #{tpu_custom_call.1} parent=5 // pred_check_branch
        %155 = sbr.rel (%p153) target = $region28
      $region27: #{tpu_custom_call.1} parent=5 // pred_region
        // Predicated region
        $region29: #{tpu_custom_call.1} parent=27 // pred_check
          %p156 = pneg %p33
        $region30: #{tpu_custom_call.1} parent=27 // pred_check_branch
          %158 = sbr.rel (%p156) target = $region32
        $region31: #{tpu_custom_call.1} parent=27 // pred_region
          %s159 = smul.u32 2, %s13
          %p160 = scmp.lt.s32.totalorder %s159, 3
          %s161 = scalar_select %p160, %s159, 3
          %s162 = smul.addr %s161, 4
          %s163 = smul.addr %s162, 4
          %s164 = scalar_lea.vmem %s0, %s163
          %s165 = smul.u32 2, %s13
        $region32: #{tpu_custom_call.1} parent=27 // pred_fallthru
          _
      $region28: #{tpu_custom_call.1} parent=5 // pred_fallthru
        _
      %p166 = scmp.le.s32.totalorder 1, %s13
      %p167 = scmp.lt.s32.totalorder %s13, 3
      %p168 = pnand %p166, %p167
      %p169 = pneg %p168
      // Predicated region
      $region33: #{tpu_custom_call.1} parent=5 // pred_check
        _
      $region34: #{tpu_custom_call.1} parent=5 // pred_check_branch
        %171 = sbr.rel (%p168) target = $region36
      $region35: #{tpu_custom_call.1} parent=5 // pred_region
        %s172 = ssub.s32 %s13, 1
        %s173 = smul.u32 2, %s18
        %p174 = scmp.lt.s32.totalorder %s173, 3
        %s175 = scalar_select %p174, %s173, 3
        %s176 = smul.addr %s175, 4
        %s177 = smul.addr %s176, 4
        %s178 = scalar_lea.vmem %s0, %s177
        %p179 = pneg %p39
        %p180 = pneg %p36
        %p181 = pneg %p60
        %p182 = pneg %p57
        %p183 = pneg %p81
        %p184 = pneg %p78
        %p185 = pneg %p102
        %p186 = pneg %p99
        %p187 = pneg %p128
        %p188 = pneg %p125
        %s189 = sand.u32 %s115, 1
        %s190 = scalar_lea.sflag [#allocation3], %s189
        %s191 = sand.u32 %s115, 1
        %s192 = smul.addr %s191, 64
        %s193 = scalar_lea.vmem [#allocation2], %s192
        %s194 = smul.u32 2, %s18
        %p195 = scmp.lt.s32.totalorder %s194, 3
        %s196 = scalar_select %p195, %s194, 3
        %s197 = smul.addr %s196, 4
        %s198 = smul.addr %s197, 4
        %s199 = scalar_lea.vmem %s0, %s198
        %s200 = smul.u32 2, %s18
        %s201 = smul.u32 2, %s18
        %v203 = vld [vmem:[%s199] sm:$0xf]
        %v204 = vld [vmem:[%s199 + $0x4] sm:$0xf]
        %v205 = vld [vmem:[%s199 + $0x8] sm:$0xf]
        %v206 = vld [vmem:[%s199 + $0xc] sm:$0xf]
        %v207 = vld [vmem:[%s199 + $0x10] sm:$0xf]
        %v208 = vld [vmem:[%s199 + $0x14] sm:$0xf]
        %v209 = vld [vmem:[%s199 + $0x18] sm:$0xf]
        %v210 = vld [vmem:[%s199 + $0x1c] sm:$0xf]
        %v215 = vunpack.c.l.b16 %v203
        %v216 = vunpack.c.l.b16 %v204
        %v217 = vunpack.c.l.b16 %v205
        %v218 = vunpack.c.l.b16 %v206
        %v219 = vpack.c.b16 %v216, %v215
        %v220 = vpack.c.b16 %v218, %v217
        %v227 = vunpack.c.l.b16 %v207
        %v228 = vunpack.c.l.b16 %v208
        %v229 = vunpack.c.l.b16 %v209
        %v230 = vunpack.c.l.b16 %v210
        %v231 = vpack.c.b16 %v228, %v227
        %v232 = vpack.c.b16 %v230, %v229
        %v235 = vld [vmem:[%s1] sm:$0xf]
        %v236 = vld [vmem:[%s1 + $0x4] sm:$0xf]
        %v237 = vld [vmem:[%s1 + $0x8] sm:$0xf]
        %v238 = vld [vmem:[%s1 + $0xc] sm:$0xf]
        %v239 = vld [vmem:[%s1 + $0x10] sm:$0xf]
        %v240 = vld [vmem:[%s1 + $0x14] sm:$0xf]
        %v241 = vld [vmem:[%s1 + $0x18] sm:$0xf]
        %v242 = vld [vmem:[%s1 + $0x1c] sm:$0xf]
        %v243 = vld [vmem:[%s1 + $0x20] sm:$0xf]
        %v244 = vld [vmem:[%s1 + $0x24] sm:$0xf]
        %v245 = vld [vmem:[%s1 + $0x28] sm:$0xf]
        %v246 = vld [vmem:[%s1 + $0x2c] sm:$0xf]
        %v259 = vunpack.c.l.b16 %v235
        %v260 = vunpack.c.l.b16 %v236
        %v261 = vunpack.c.l.b16 %v237
        %v262 = vunpack.c.l.b16 %v238
        %v263 = vunpack.c.l.b16 %v239
        %v264 = vunpack.c.l.b16 %v240
        %v265 = vunpack.c.l.b16 %v241
        %v266 = vunpack.c.l.b16 %v242
        %v267 = vunpack.c.l.b16 %v243
        %v268 = vunpack.c.l.b16 %v244
        %v269 = vunpack.c.l.b16 %v245
        %v270 = vunpack.c.l.b16 %v246
        %v271 = vpack.c.b16 %v260, %v259
        %v272 = vpack.c.b16 %v262, %v261
        %v273 = vpack.c.b16 %v264, %v263
        %v274 = vpack.c.b16 %v266, %v265
        %v275 = vpack.c.b16 %v268, %v267
        %v276 = vpack.c.b16 %v270, %v269
        %vm277 = vcmask 261120
        %v279 = vsel %vm277, %v271, 0
        %v282 = vsel %vm277, %v272, 0
        %v285 = vsel %vm277, %v273, 0
        %v288 = vsel %vm277, %v274, 0
        %v291 = vsel %vm277, %v275, 0
        %v294 = vsel %vm277, %v276, 0
        %296 = vmatprep.subr.bf16.mxu0 0
        %297 = vmatpush1.bf16.msra.mxu0 0
        %298 = vmatprep.subr.bf16.mxu0 0
        %299 = vmatpush1.bf16.msra.mxu0 0
        %300 = vmatprep.subr.bf16.mxu0 0
        %301 = vmatpush1.bf16.msra.mxu0 0
        %302 = vmatprep.subr.bf16.mxu0 0
        %303 = vmatpush1.bf16.msra.mxu0 0
        %304 = vmatprep.subr.bf16.mxu0 0
        %305 = vmatpush1.bf16.msra.mxu0 0
        %306 = vmatprep.subr.bf16.mxu0 0
        %307 = vmatpush1.bf16.msra.mxu0 0
        %308 = vmatprep.subr.bf16.mxu0 %v232
        %309 = vmatpush1.bf16.msra.mxu0 %v220
        %310 = vmatprep.subr.bf16.mxu0 %v231
        %311 = vmatpush1.bf16.msra.mxu0 %v219
        %312 = vmatprep.subr.bf16.mxu0 0
        %313 = vmatpush2.bf16.msra.mxu0 0
        %314 = vmatprep.subr.bf16.mxu0 0
        %315 = vmatpush2.bf16.msra.mxu0 0
        %316 = vmatprep.subr.bf16.mxu0 0
        %317 = vmatpush2.bf16.msra.mxu0 0
        %318 = vmatprep.subr.bf16.mxu0 0
        %319 = vmatpush2.bf16.msra.mxu0 0
        %320 = vmatprep.subr.bf16.mxu0 0
        %321 = vmatpush2.bf16.msra.mxu0 0
        %322 = vmatprep.subr.bf16.mxu0 0
        %323 = vmatpush2.bf16.msra.mxu0 0
        %324 = vmatprep.subr.bf16.mxu0 0
        %325 = vmatpush2.bf16.msra.mxu0 0
        %326 = vmatprep.subr.bf16.mxu0 0
        %327 = vmatpush2.bf16.msra.mxu0 0
        %328 = vmatprep.mubr.bf16.mxu0 0
        %329 = vmatmul.mubr.bf16.gmra.mxu0 %v279
        %v330 = vpop.f32.mrf.mxu0
        %v331 = vadd.f32 0.0, %v330
        %v332 = vpop.f32.mrf.mxu0
        %v333 = vadd.f32 0.0, %v332
        %v334 = vpop.f32.mrf.mxu0
        %v335 = vadd.f32 0.0, %v334
        %v336 = vpop.f32.mrf.mxu0
        %v337 = vadd.f32 0.0, %v336
        %338 = vmatprep.mubr.bf16.mxu0 0
        %339 = vmatmul.mubr.bf16.gmra.mxu0 %v282
        %v340 = vpop.f32.mrf.mxu0
        %v341 = vadd.f32 0.0, %v340
        %v342 = vpop.f32.mrf.mxu0
        %v343 = vadd.f32 0.0, %v342
        %v344 = vpop.f32.mrf.mxu0
        %v345 = vadd.f32 0.0, %v344
        %v346 = vpop.f32.mrf.mxu0
        %v347 = vadd.f32 0.0, %v346
        %348 = vmatprep.mubr.bf16.mxu0 0
        %349 = vmatmul.mubr.bf16.gmra.mxu0 %v285
        %v350 = vpop.f32.mrf.mxu0
        %v351 = vadd.f32 0.0, %v350
        %v352 = vpop.f32.mrf.mxu0
        %v353 = vadd.f32 0.0, %v352
        %v354 = vpop.f32.mrf.mxu0
        %v355 = vadd.f32 0.0, %v354
        %v356 = vpop.f32.mrf.mxu0
        %v357 = vadd.f32 0.0, %v356
        %358 = vmatprep.mubr.bf16.mxu0 0
        %359 = vmatmul.mubr.bf16.gmra.mxu0 %v288
        %v360 = vpop.f32.mrf.mxu0
        %v361 = vadd.f32 0.0, %v360
        %v362 = vpop.f32.mrf.mxu0
        %v363 = vadd.f32 0.0, %v362
        %v364 = vpop.f32.mrf.mxu0
        %v365 = vadd.f32 0.0, %v364
        %v366 = vpop.f32.mrf.mxu0
        %v367 = vadd.f32 0.0, %v366
        %368 = vmatprep.mubr.bf16.mxu0 0
        %369 = vmatmul.mubr.bf16.gmra.mxu0 %v291
        %v370 = vpop.f32.mrf.mxu0
        %v371 = vadd.f32 0.0, %v370
        %v372 = vpop.f32.mrf.mxu0
        %v373 = vadd.f32 0.0, %v372
        %v374 = vpop.f32.mrf.mxu0
        %v375 = vadd.f32 0.0, %v374
        %v376 = vpop.f32.mrf.mxu0
        %v377 = vadd.f32 0.0, %v376
        %378 = vmatprep.mubr.bf16.mxu0 0
        %379 = vmatmul.mubr.bf16.gmra.mxu0 %v294
        %v380 = vpop.f32.mrf.mxu0
        %v381 = vadd.f32 0.0, %v380
        %v382 = vpop.f32.mrf.mxu0
        %v383 = vadd.f32 0.0, %v382
        %v384 = vpop.f32.mrf.mxu0
        %v385 = vadd.f32 0.0, %v384
        %v386 = vpop.f32.mrf.mxu0
        %v387 = vadd.f32 0.0, %v386
        %388 = vdwg.mxu0
        %v389 = vpack.c.bf16 %v335, %v331
        %v390 = vpack.c.bf16 %v337, %v333
        %v391 = vpack.c.bf16 %v345, %v341
        %v392 = vpack.c.bf16 %v347, %v343
        %v393 = vpack.c.bf16 %v355, %v351
        %v394 = vpack.c.bf16 %v357, %v353
        %v395 = vpack.c.bf16 %v365, %v361
        %v396 = vpack.c.bf16 %v367, %v363
        %v397 = vpack.c.bf16 %v375, %v371
        %v398 = vpack.c.bf16 %v377, %v373
        %v399 = vpack.c.bf16 %v385, %v381
        %v400 = vpack.c.bf16 %v387, %v383
        %401 = vxpose.xlu0.c.b16.start [1/8] %v389, 128
        %402 = vxpose.xlu0.c.b16.cont [2/8] 0, 128
        %403 = vxpose.xlu0.c.b16.cont [3/8] 0, 128
        %404 = vxpose.xlu0.c.b16.cont [4/8] 0, 128
        %405 = vxpose.xlu0.c.b16.cont [5/8] 0, 128
        %406 = vxpose.xlu0.c.b16.cont [6/8] 0, 128
        %407 = vxpose.xlu0.c.b16.cont [7/8] 0, 128
        %408 = vxpose.xlu0.c.b16.end [8/8] 0, 128
        %v409 = vpop.trf.xlu0
        %v410 = vpop.trf.xlu0
        %v411 = vpop.trf.xlu0
        %v412 = vpop.trf.xlu0
        %v413 = vpop.trf.xlu0
        %v414 = vpop.trf.xlu0
        %v415 = vpop.trf.xlu0
        %v416 = vpop.trf.xlu0
        %vm417 = vcmask 130048
        %v419 = vsel %vm417, %v409, 0
        %v422 = vsel %vm417, %v410, 0
        %v425 = vsel %vm417, %v411, 0
        %v428 = vsel %vm417, %v412, 0
        %v431 = vsel %vm417, %v413, 0
        %v434 = vsel %vm417, %v414, 0
        %v437 = vsel %vm417, %v415, 0
        %v440 = vsel %vm417, %v416, 0
        %442 = vmatprep.subr.bf16.mxu0 0
        %443 = vmatpush1.bf16.msra.mxu0 0
        %444 = vmatprep.subr.bf16.mxu0 0
        %445 = vmatpush1.bf16.msra.mxu0 0
        %446 = vmatprep.subr.bf16.mxu0 0
        %447 = vmatpush1.bf16.msra.mxu0 0
        %448 = vmatprep.subr.bf16.mxu0 0
        %449 = vmatpush1.bf16.msra.mxu0 0
        %450 = vmatprep.subr.bf16.mxu0 0
        %451 = vmatpush1.bf16.msra.mxu0 0
        %452 = vmatprep.subr.bf16.mxu0 0
        %453 = vmatpush1.bf16.msra.mxu0 0
        %454 = vmatprep.subr.bf16.mxu0 0
        %455 = vmatpush1.bf16.msra.mxu0 0
        %456 = vmatprep.subr.bf16.mxu0 0
        %457 = vmatpush1.bf16.msra.mxu0 %v393
        %458 = vmatprep.subr.bf16.mxu0 0
        %459 = vmatpush2.bf16.msra.mxu0 0
        %460 = vmatprep.subr.bf16.mxu0 0
        %461 = vmatpush2.bf16.msra.mxu0 0
        %462 = vmatprep.subr.bf16.mxu0 0
        %463 = vmatpush2.bf16.msra.mxu0 0
        %464 = vmatprep.subr.bf16.mxu0 0
        %465 = vmatpush2.bf16.msra.mxu0 0
        %466 = vmatprep.subr.bf16.mxu0 0
        %467 = vmatpush2.bf16.msra.mxu0 0
        %468 = vmatprep.subr.bf16.mxu0 0
        %469 = vmatpush2.bf16.msra.mxu0 0
        %470 = vmatprep.subr.bf16.mxu0 0
        %471 = vmatpush2.bf16.msra.mxu0 0
        %472 = vmatprep.subr.bf16.mxu0 0
        %473 = vmatpush2.bf16.msra.mxu0 0
        %474 = vmatprep.mubr.bf16.mxu0 0
        %475 = vmatmul.mubr.bf16.gmra.mxu0 %v419
        %v476 = vpop.f32.mrf.mxu0
        %v477 = vadd.f32 0.0, %v476
        %v478 = vpop.f32.mrf.mxu0
        %v479 = vpop.f32.mrf.mxu0
        %v480 = vadd.f32 0.0, %v479
        %v481 = vpop.f32.mrf.mxu0
        %482 = vmatprep.mubr.bf16.mxu0 0
        %483 = vmatmul.mubr.bf16.gmra.mxu0 %v422
        %v484 = vpop.f32.mrf.mxu0
        %v485 = vadd.f32 0.0, %v484
        %v486 = vpop.f32.mrf.mxu0
        %v487 = vpop.f32.mrf.mxu0
        %v488 = vadd.f32 0.0, %v487
        %v489 = vpop.f32.mrf.mxu0
        %490 = vmatprep.mubr.bf16.mxu0 0
        %491 = vmatmul.mubr.bf16.gmra.mxu0 %v425
        %v492 = vpop.f32.mrf.mxu0
        %v493 = vadd.f32 0.0, %v492
        %v494 = vpop.f32.mrf.mxu0
        %v495 = vpop.f32.mrf.mxu0
        %v496 = vadd.f32 0.0, %v495
        %v497 = vpop.f32.mrf.mxu0
        %498 = vmatprep.mubr.bf16.mxu0 0
        %499 = vmatmul.mubr.bf16.gmra.mxu0 %v428
        %v500 = vpop.f32.mrf.mxu0
        %v501 = vadd.f32 0.0, %v500
        %v502 = vpop.f32.mrf.mxu0
        %v503 = vpop.f32.mrf.mxu0
        %v504 = vadd.f32 0.0, %v503
        %v505 = vpop.f32.mrf.mxu0
        %506 = vmatprep.mubr.bf16.mxu0 0
        %507 = vmatmul.mubr.bf16.gmra.mxu0 %v431
        %v508 = vpop.f32.mrf.mxu0
        %v509 = vadd.f32 0.0, %v508
        %v510 = vpop.f32.mrf.mxu0
        %v511 = vpop.f32.mrf.mxu0
        %v512 = vadd.f32 0.0, %v511
        %v513 = vpop.f32.mrf.mxu0
        %514 = vmatprep.mubr.bf16.mxu0 0
        %515 = vmatmul.mubr.bf16.gmra.mxu0 %v434
        %v516 = vpop.f32.mrf.mxu0
        %v517 = vadd.f32 0.0, %v516
        %v518 = vpop.f32.mrf.mxu0
        %v519 = vpop.f32.mrf.mxu0
        %v520 = vadd.f32 0.0, %v519
        %v521 = vpop.f32.mrf.mxu0
        %522 = vmatprep.mubr.bf16.mxu0 0
        %523 = vmatmul.mubr.bf16.gmra.mxu0 %v437
        %v524 = vpop.f32.mrf.mxu0
        %v525 = vadd.f32 0.0, %v524
        %v526 = vpop.f32.mrf.mxu0
        %v527 = vpop.f32.mrf.mxu0
        %v528 = vadd.f32 0.0, %v527
        %v529 = vpop.f32.mrf.mxu0
        %530 = vmatprep.mubr.bf16.mxu0 0
        %531 = vmatmul.mubr.bf16.gmra.mxu0 %v440
        %v532 = vpop.f32.mrf.mxu0
        %v533 = vadd.f32 0.0, %v532
        %v534 = vpop.f32.mrf.mxu0
        %v535 = vpop.f32.mrf.mxu0
        %v536 = vadd.f32 0.0, %v535
        %v537 = vpop.f32.mrf.mxu0
        %538 = vdwg.mxu0
        %539 = vmax.xlane.f32.xlu0 %v477
        %v540 = vpop.xlane.xlu0 %539
        %541 = vmax.xlane.f32.xlu0 %v480
        %v542 = vpop.xlane.xlu0 %541
        %543 = vmax.xlane.f32.xlu0 %v485
        %v544 = vpop.xlane.xlu0 %543
        %545 = vmax.xlane.f32.xlu0 %v488
        %v546 = vpop.xlane.xlu0 %545
        %547 = vmax.xlane.f32.xlu0 %v493
        %v548 = vpop.xlane.xlu0 %547
        %549 = vmax.xlane.f32.xlu0 %v496
        %v550 = vpop.xlane.xlu0 %549
        %551 = vmax.xlane.f32.xlu0 %v501
        %v552 = vpop.xlane.xlu0 %551
        %553 = vmax.xlane.f32.xlu0 %v504
        %v554 = vpop.xlane.xlu0 %553
        %555 = vmax.xlane.f32.xlu0 %v509
        %v556 = vpop.xlane.xlu0 %555
        %557 = vmax.xlane.f32.xlu0 %v512
        %v558 = vpop.xlane.xlu0 %557
        %559 = vmax.xlane.f32.xlu0 %v517
        %v560 = vpop.xlane.xlu0 %559
        %561 = vmax.xlane.f32.xlu0 %v520
        %v562 = vpop.xlane.xlu0 %561
        %563 = vmax.xlane.f32.xlu0 %v525
        %v564 = vpop.xlane.xlu0 %563
        %565 = vmax.xlane.f32.xlu0 %v528
        %v566 = vpop.xlane.xlu0 %565
        %567 = vmax.xlane.f32.xlu0 %v533
        %v568 = vpop.xlane.xlu0 %567
        %569 = vmax.xlane.f32.xlu0 %v536
        %v570 = vpop.xlane.xlu0 %569
        %v571 = vsub.f32 -inf, %v540
        %v572 = vsub.f32 -inf, %v542
        %v573 = vsub.f32 -inf, %v544
        %v574 = vsub.f32 -inf, %v546
        %v575 = vsub.f32 -inf, %v548
        %v576 = vsub.f32 -inf, %v550
        %v577 = vsub.f32 -inf, %v552
        %v578 = vsub.f32 -inf, %v554
        %v579 = vsub.f32 -inf, %v556
        %v580 = vsub.f32 -inf, %v558
        %v581 = vsub.f32 -inf, %v560
        %v582 = vsub.f32 -inf, %v562
        %v583 = vsub.f32 -inf, %v564
        %v584 = vsub.f32 -inf, %v566
        %v585 = vsub.f32 -inf, %v568
        %v586 = vsub.f32 -inf, %v570
        %v587 = vmul.f32 %v571, 1.442695
        %v588 = vpow.pop %v587
        %v589 = vmul.f32 %v572, 1.442695
        %v590 = vpow.pop %v589
        %v591 = vmul.f32 %v573, 1.442695
        %v592 = vpow.pop %v591
        %v593 = vmul.f32 %v574, 1.442695
        %v594 = vpow.pop %v593
        %v595 = vmul.f32 %v575, 1.442695
        %v596 = vpow.pop %v595
        %v597 = vmul.f32 %v576, 1.442695
        %v598 = vpow.pop %v597
        %v599 = vmul.f32 %v577, 1.442695
        %v600 = vpow.pop %v599
        %v601 = vmul.f32 %v578, 1.442695
        %v602 = vpow.pop %v601
        %v603 = vmul.f32 %v579, 1.442695
        %v604 = vpow.pop %v603
        %v605 = vmul.f32 %v580, 1.442695
        %v606 = vpow.pop %v605
        %v607 = vmul.f32 %v581, 1.442695
        %v608 = vpow.pop %v607
        %v609 = vmul.f32 %v582, 1.442695
        %v610 = vpow.pop %v609
        %v611 = vmul.f32 %v583, 1.442695
        %v612 = vpow.pop %v611
        %v613 = vmul.f32 %v584, 1.442695
        %v614 = vpow.pop %v613
        %v615 = vmul.f32 %v585, 1.442695
        %v616 = vpow.pop %v615
        %v617 = vmul.f32 %v586, 1.442695
        %v618 = vpow.pop %v617
        %v619 = vsub.f32 %v477, %v540
        %v620 = vsub.f32 %v480, %v542
        %v621 = vsub.f32 %v485, %v544
        %v622 = vsub.f32 %v488, %v546
        %v623 = vsub.f32 %v493, %v548
        %v624 = vsub.f32 %v496, %v550
        %v625 = vsub.f32 %v501, %v552
        %v626 = vsub.f32 %v504, %v554
        %v627 = vsub.f32 %v509, %v556
        %v628 = vsub.f32 %v512, %v558
        %v629 = vsub.f32 %v517, %v560
        %v630 = vsub.f32 %v520, %v562
        %v631 = vsub.f32 %v525, %v564
        %v632 = vsub.f32 %v528, %v566
        %v633 = vsub.f32 %v533, %v568
        %v634 = vsub.f32 %v536, %v570
        %v635 = vmul.f32 %v619, 1.442695
        %v636 = vpow.pop %v635
        %v637 = vmul.f32 %v620, 1.442695
        %v638 = vpow.pop %v637
        %v639 = vmul.f32 %v621, 1.442695
        %v640 = vpow.pop %v639
        %v641 = vmul.f32 %v622, 1.442695
        %v642 = vpow.pop %v641
        %v643 = vmul.f32 %v623, 1.442695
        %v644 = vpow.pop %v643
        %v645 = vmul.f32 %v624, 1.442695
        %v646 = vpow.pop %v645
        %v647 = vmul.f32 %v625, 1.442695
        %v648 = vpow.pop %v647
        %v649 = vmul.f32 %v626, 1.442695
        %v650 = vpow.pop %v649
        %v651 = vmul.f32 %v627, 1.442695
        %v652 = vpow.pop %v651
        %v653 = vmul.f32 %v628, 1.442695
        %v654 = vpow.pop %v653
        %v655 = vmul.f32 %v629, 1.442695
        %v656 = vpow.pop %v655
        %v657 = vmul.f32 %v630, 1.442695
        %v658 = vpow.pop %v657
        %v659 = vmul.f32 %v631, 1.442695
        %v660 = vpow.pop %v659
        %v661 = vmul.f32 %v632, 1.442695
        %v662 = vpow.pop %v661
        %v663 = vmul.f32 %v633, 1.442695
        %v664 = vpow.pop %v663
        %v665 = vmul.f32 %v634, 1.442695
        %v666 = vpow.pop %v665
        %v667 = vmul.f32 %v588, 0.0
        %v668 = vmul.f32 %v590, 0.0
        %v669 = vmul.f32 %v592, 0.0
        %v670 = vmul.f32 %v594, 0.0
        %v671 = vmul.f32 %v596, 0.0
        %v672 = vmul.f32 %v598, 0.0
        %v673 = vmul.f32 %v600, 0.0
        %v674 = vmul.f32 %v602, 0.0
        %v675 = vmul.f32 %v604, 0.0
        %v676 = vmul.f32 %v606, 0.0
        %v677 = vmul.f32 %v608, 0.0
        %v678 = vmul.f32 %v610, 0.0
        %v679 = vmul.f32 %v612, 0.0
        %v680 = vmul.f32 %v614, 0.0
        %v681 = vmul.f32 %v616, 0.0
        %v682 = vmul.f32 %v618, 0.0
        %683 = vadd.xlane.f32.xlu0 %v636
        %v684 = vpop.xlane.xlu0 %683
        %685 = vadd.xlane.f32.xlu0 %v638
        %v686 = vpop.xlane.xlu0 %685
        %687 = vadd.xlane.f32.xlu0 %v640
        %v688 = vpop.xlane.xlu0 %687
        %689 = vadd.xlane.f32.xlu0 %v642
        %v690 = vpop.xlane.xlu0 %689
        %691 = vadd.xlane.f32.xlu0 %v644
        %v692 = vpop.xlane.xlu0 %691
        %693 = vadd.xlane.f32.xlu0 %v646
        %v694 = vpop.xlane.xlu0 %693
        %695 = vadd.xlane.f32.xlu0 %v648
        %v696 = vpop.xlane.xlu0 %695
        %697 = vadd.xlane.f32.xlu0 %v650
        %v698 = vpop.xlane.xlu0 %697
        %699 = vadd.xlane.f32.xlu0 %v652
        %v700 = vpop.xlane.xlu0 %699
        %701 = vadd.xlane.f32.xlu0 %v654
        %v702 = vpop.xlane.xlu0 %701
        %703 = vadd.xlane.f32.xlu0 %v656
        %v704 = vpop.xlane.xlu0 %703
        %705 = vadd.xlane.f32.xlu0 %v658
        %v706 = vpop.xlane.xlu0 %705
        %707 = vadd.xlane.f32.xlu0 %v660
        %v708 = vpop.xlane.xlu0 %707
        %709 = vadd.xlane.f32.xlu0 %v662
        %v710 = vpop.xlane.xlu0 %709
        %711 = vadd.xlane.f32.xlu0 %v664
        %v712 = vpop.xlane.xlu0 %711
        %713 = vadd.xlane.f32.xlu0 %v666
        %v714 = vpop.xlane.xlu0 %713
        %v715 = vadd.f32 %v667, %v684
        %v716 = vadd.f32 %v668, %v686
        %v717 = vadd.f32 %v669, %v688
        %v718 = vadd.f32 %v670, %v690
        %v719 = vadd.f32 %v671, %v692
        %v720 = vadd.f32 %v672, %v694
        %v721 = vadd.f32 %v673, %v696
        %v722 = vadd.f32 %v674, %v698
        %v723 = vadd.f32 %v675, %v700
        %v724 = vadd.f32 %v676, %v702
        %v725 = vadd.f32 %v677, %v704
        %v726 = vadd.f32 %v678, %v706
        %v727 = vadd.f32 %v679, %v708
        %v728 = vadd.f32 %v680, %v710
        %v729 = vadd.f32 %v681, %v712
        %v730 = vadd.f32 %v682, %v714
        %v731 = vpack.c.bf16 %v638, %v636
        %v732 = vpack.c.bf16 %v642, %v640
        %v733 = vpack.c.bf16 %v646, %v644
        %v734 = vpack.c.bf16 %v650, %v648
        %v735 = vpack.c.bf16 %v654, %v652
        %v736 = vpack.c.bf16 %v658, %v656
        %v737 = vpack.c.bf16 %v662, %v660
        %v738 = vpack.c.bf16 %v666, %v664
        %739 = vmatprep.subr.bf16.mxu0 0
        %740 = vmatpush1.bf16.xpose.msra.mxu0 0
        %741 = vmatprep.subr.bf16.mxu0 0
        %742 = vmatpush1.bf16.xpose.msra.mxu0 0
        %743 = vmatprep.subr.bf16.mxu0 0
        %744 = vmatpush1.bf16.xpose.msra.mxu0 0
        %745 = vmatprep.subr.bf16.mxu0 0
        %746 = vmatpush1.bf16.xpose.msra.mxu0 0
        %747 = vmatprep.subr.bf16.mxu0 0
        %748 = vmatpush1.bf16.xpose.msra.mxu0 0
        %749 = vmatprep.subr.bf16.mxu0 0
        %750 = vmatpush1.bf16.xpose.msra.mxu0 0
        %751 = vmatprep.subr.bf16.mxu0 0
        %752 = vmatpush1.bf16.xpose.msra.mxu0 0
        %753 = vmatprep.subr.bf16.mxu0 0
        %754 = vmatpush1.bf16.xpose.msra.mxu0 %v397
        %755 = vmatprep.subr.bf16.mxu0 0
        %756 = vmatpush2.bf16.xpose.msra.mxu0 0
        %757 = vmatprep.subr.bf16.mxu0 0
        %758 = vmatpush2.bf16.xpose.msra.mxu0 0
        %759 = vmatprep.subr.bf16.mxu0 0
        %760 = vmatpush2.bf16.xpose.msra.mxu0 0
        %761 = vmatprep.subr.bf16.mxu0 0
        %762 = vmatpush2.bf16.xpose.msra.mxu0 0
        %763 = vmatprep.subr.bf16.mxu0 0
        %764 = vmatpush2.bf16.xpose.msra.mxu0 0
        %765 = vmatprep.subr.bf16.mxu0 0
        %766 = vmatpush2.bf16.xpose.msra.mxu0 0
        %767 = vmatprep.subr.bf16.mxu0 0
        %768 = vmatpush2.bf16.xpose.msra.mxu0 0
        %769 = vmatprep.subr.bf16.mxu0 0
        %770 = vmatpush2.bf16.xpose.msra.mxu0 0
        %771 = vmatprep.mubr.bf16.mxu0 0
        %772 = vmatmul.mubr.bf16.gmra.mxu0 %v731
        %v773 = vpop.f32.mrf.mxu0
        %v774 = vadd.f32 0.0, %v773
        %v775 = vpop.f32.mrf.mxu0
        %v776 = vpop.f32.mrf.mxu0
        %v777 = vadd.f32 0.0, %v776
        %v778 = vpop.f32.mrf.mxu0
        %779 = vmatprep.mubr.bf16.mxu0 0
        %780 = vmatmul.mubr.bf16.gmra.mxu0 %v732
        %v781 = vpop.f32.mrf.mxu0
        %v782 = vadd.f32 0.0, %v781
        %v783 = vpop.f32.mrf.mxu0
        %v784 = vpop.f32.mrf.mxu0
        %v785 = vadd.f32 0.0, %v784
        %v786 = vpop.f32.mrf.mxu0
        %787 = vmatprep.mubr.bf16.mxu0 0
        %788 = vmatmul.mubr.bf16.gmra.mxu0 %v733
        %v789 = vpop.f32.mrf.mxu0
        %v790 = vadd.f32 0.0, %v789
        %v791 = vpop.f32.mrf.mxu0
        %v792 = vpop.f32.mrf.mxu0
        %v793 = vadd.f32 0.0, %v792
        %v794 = vpop.f32.mrf.mxu0
        %795 = vmatprep.mubr.bf16.mxu0 0
        %796 = vmatmul.mubr.bf16.gmra.mxu0 %v734
        %v797 = vpop.f32.mrf.mxu0
        %v798 = vadd.f32 0.0, %v797
        %v799 = vpop.f32.mrf.mxu0
        %v800 = vpop.f32.mrf.mxu0
        %v801 = vadd.f32 0.0, %v800
        %v802 = vpop.f32.mrf.mxu0
        %803 = vmatprep.mubr.bf16.mxu0 0
        %804 = vmatmul.mubr.bf16.gmra.mxu0 %v735
        %v805 = vpop.f32.mrf.mxu0
        %v806 = vadd.f32 0.0, %v805
        %v807 = vpop.f32.mrf.mxu0
        %v808 = vpop.f32.mrf.mxu0
        %v809 = vadd.f32 0.0, %v808
        %v810 = vpop.f32.mrf.mxu0
        %811 = vmatprep.mubr.bf16.mxu0 0
        %812 = vmatmul.mubr.bf16.gmra.mxu0 %v736
        %v813 = vpop.f32.mrf.mxu0
        %v814 = vadd.f32 0.0, %v813
        %v815 = vpop.f32.mrf.mxu0
        %v816 = vpop.f32.mrf.mxu0
        %v817 = vadd.f32 0.0, %v816
        %v818 = vpop.f32.mrf.mxu0
        %819 = vmatprep.mubr.bf16.mxu0 0
        %820 = vmatmul.mubr.bf16.gmra.mxu0 %v737
        %v821 = vpop.f32.mrf.mxu0
        %v822 = vadd.f32 0.0, %v821
        %v823 = vpop.f32.mrf.mxu0
        %v824 = vpop.f32.mrf.mxu0
        %v825 = vadd.f32 0.0, %v824
        %v826 = vpop.f32.mrf.mxu0
        %827 = vmatprep.mubr.bf16.mxu0 0
        %828 = vmatmul.mubr.bf16.gmra.mxu0 %v738
        %v829 = vpop.f32.mrf.mxu0
        %v830 = vadd.f32 0.0, %v829
        %v831 = vpop.f32.mrf.mxu0
        %v832 = vpop.f32.mrf.mxu0
        %v833 = vadd.f32 0.0, %v832
        %v834 = vpop.f32.mrf.mxu0
        %835 = vdwg.mxu0
        %v836 = vadd.f32 %v667, %v774
        %v837 = vadd.f32 %v668, %v777
        %v838 = vadd.f32 %v669, %v782
        %v839 = vadd.f32 %v670, %v785
        %v840 = vadd.f32 %v671, %v790
        %v841 = vadd.f32 %v672, %v793
        %v842 = vadd.f32 %v673, %v798
        %v843 = vadd.f32 %v674, %v801
        %v844 = vadd.f32 %v675, %v806
        %v845 = vadd.f32 %v676, %v809
        %v846 = vadd.f32 %v677, %v814
        %v847 = vadd.f32 %v678, %v817
        %v848 = vadd.f32 %v679, %v822
        %v849 = vadd.f32 %v680, %v825
        %v850 = vadd.f32 %v681, %v830
        %v851 = vadd.f32 %v682, %v833
        %v852 = vrcp.pop %v715
        %v853 = vrcp.pop %v716
        %v854 = vrcp.pop %v717
        %v855 = vrcp.pop %v718
        %v856 = vrcp.pop %v719
        %v857 = vrcp.pop %v720
        %v858 = vrcp.pop %v721
        %v859 = vrcp.pop %v722
        %v860 = vrcp.pop %v723
        %v861 = vrcp.pop %v724
        %v862 = vrcp.pop %v725
        %v863 = vrcp.pop %v726
        %v864 = vrcp.pop %v727
        %v865 = vrcp.pop %v728
        %v866 = vrcp.pop %v729
        %v867 = vrcp.pop %v730
        %v868 = vmul.f32 %v836, %v852
        %v869 = vmul.f32 %v837, %v853
        %v870 = vmul.f32 %v838, %v854
        %v871 = vmul.f32 %v839, %v855
        %v872 = vmul.f32 %v840, %v856
        %v873 = vmul.f32 %v841, %v857
        %v874 = vmul.f32 %v842, %v858
        %v875 = vmul.f32 %v843, %v859
        %v876 = vmul.f32 %v844, %v860
        %v877 = vmul.f32 %v845, %v861
        %v878 = vmul.f32 %v846, %v862
        %v879 = vmul.f32 %v847, %v863
        %v880 = vmul.f32 %v848, %v864
        %v881 = vmul.f32 %v849, %v865
        %v882 = vmul.f32 %v850, %v866
        %v883 = vmul.f32 %v851, %v867
        %v884 = vpack.c.bf16 %v869, %v868
        %v885 = vpack.c.bf16 %v871, %v870
        %v886 = vpack.c.bf16 %v873, %v872
        %v887 = vpack.c.bf16 %v875, %v874
        %v888 = vpack.c.bf16 %v877, %v876
        %v889 = vpack.c.bf16 %v879, %v878
        %v890 = vpack.c.bf16 %v881, %v880
        %v891 = vpack.c.bf16 %v883, %v882
        %v892 = vld [vmem:[%s2] sm:$0xf]
        %v893 = vld [vmem:[%s2 + $0x4] sm:$0xf]
        %v894 = vld [vmem:[%s2 + $0x8] sm:$0xf]
        %v895 = vld [vmem:[%s2 + $0xc] sm:$0xf]
        %896 = vxpose.xlu0.c.b16.start [1/8] %v391, 128
        %897 = vxpose.xlu0.c.b16.cont [2/8] 0, 128
        %898 = vxpose.xlu0.c.b16.cont [3/8] 0, 128
        %899 = vxpose.xlu0.c.b16.cont [4/8] 0, 128
        %900 = vxpose.xlu0.c.b16.cont [5/8] 0, 128
        %901 = vxpose.xlu0.c.b16.cont [6/8] 0, 128
        %902 = vxpose.xlu0.c.b16.cont [7/8] 0, 128
        %903 = vxpose.xlu0.c.b16.end [8/8] 0, 128
        %v904 = vpop.trf.xlu0
        %v905 = vpop.trf.xlu0
        %v906 = vpop.trf.xlu0
        %v907 = vpop.trf.xlu0
        %v908 = vpop.trf.xlu0
        %v909 = vpop.trf.xlu0
        %v910 = vpop.trf.xlu0
        %v911 = vpop.trf.xlu0
        %v913 = vsel %vm417, %v904, 0
        %v916 = vsel %vm417, %v905, 0
        %v919 = vsel %vm417, %v906, 0
        %v922 = vsel %vm417, %v907, 0
        %v925 = vsel %vm417, %v908, 0
        %v928 = vsel %vm417, %v909, 0
        %v931 = vsel %vm417, %v910, 0
        %v934 = vsel %vm417, %v911, 0
        %936 = vmatprep.subr.bf16.mxu0 0
        %937 = vmatpush1.bf16.msra.mxu0 0
        %938 = vmatprep.subr.bf16.mxu0 0
        %939 = vmatpush1.bf16.msra.mxu0 0
        %940 = vmatprep.subr.bf16.mxu0 0
        %941 = vmatpush1.bf16.msra.mxu0 0
        %942 = vmatprep.subr.bf16.mxu0 0
        %943 = vmatpush1.bf16.msra.mxu0 0
        %944 = vmatprep.subr.bf16.mxu0 0
        %945 = vmatpush1.bf16.msra.mxu0 0
        %946 = vmatprep.subr.bf16.mxu0 0
        %947 = vmatpush1.bf16.msra.mxu0 0
        %948 = vmatprep.subr.bf16.mxu0 0
        %949 = vmatpush1.bf16.msra.mxu0 0
        %950 = vmatprep.subr.bf16.mxu0 0
        %951 = vmatpush1.bf16.msra.mxu0 %v395
        %952 = vmatprep.subr.bf16.mxu0 0
        %953 = vmatpush2.bf16.msra.mxu0 0
        %954 = vmatprep.subr.bf16.mxu0 0
        %955 = vmatpush2.bf16.msra.mxu0 0
        %956 = vmatprep.subr.bf16.mxu0 0
        %957 = vmatpush2.bf16.msra.mxu0 0
        %958 = vmatprep.subr.bf16.mxu0 0
        %959 = vmatpush2.bf16.msra.mxu0 0
        %960 = vmatprep.subr.bf16.mxu0 0
        %961 = vmatpush2.bf16.msra.mxu0 0
        %962 = vmatprep.subr.bf16.mxu0 0
        %963 = vmatpush2.bf16.msra.mxu0 0
        %964 = vmatprep.subr.bf16.mxu0 0
        %965 = vmatpush2.bf16.msra.mxu0 0
        %966 = vmatprep.subr.bf16.mxu0 0
        %967 = vmatpush2.bf16.msra.mxu0 0
        %968 = vmatprep.mubr.bf16.mxu0 0
        %969 = vmatmul.mubr.bf16.gmra.mxu0 %v913
        %v970 = vpop.f32.mrf.mxu0
        %v971 = vadd.f32 0.0, %v970
        %v972 = vpop.f32.mrf.mxu0
        %v973 = vpop.f32.mrf.mxu0
        %v974 = vadd.f32 0.0, %v973
        %v975 = vpop.f32.mrf.mxu0
        %976 = vmatprep.mubr.bf16.mxu0 0
        %977 = vmatmul.mubr.bf16.gmra.mxu0 %v916
        %v978 = vpop.f32.mrf.mxu0
        %v979 = vadd.f32 0.0, %v978
        %v980 = vpop.f32.mrf.mxu0
        %v981 = vpop.f32.mrf.mxu0
        %v982 = vadd.f32 0.0, %v981
        %v983 = vpop.f32.mrf.mxu0
        %984 = vmatprep.mubr.bf16.mxu0 0
        %985 = vmatmul.mubr.bf16.gmra.mxu0 %v919
        %v986 = vpop.f32.mrf.mxu0
        %v987 = vadd.f32 0.0, %v986
        %v988 = vpop.f32.mrf.mxu0
        %v989 = vpop.f32.mrf.mxu0
        %v990 = vadd.f32 0.0, %v989
        %v991 = vpop.f32.mrf.mxu0
        %992 = vmatprep.mubr.bf16.mxu0 0
        %993 = vmatmul.mubr.bf16.gmra.mxu0 %v922
        %v994 = vpop.f32.mrf.mxu0
        %v995 = vadd.f32 0.0, %v994
        %v996 = vpop.f32.mrf.mxu0
        %v997 = vpop.f32.mrf.mxu0
        %v998 = vadd.f32 0.0, %v997
        %v999 = vpop.f32.mrf.mxu0
        %1000 = vmatprep.mubr.bf16.mxu0 0
        %1001 = vmatmul.mubr.bf16.gmra.mxu0 %v925
        %v1002 = vpop.f32.mrf.mxu0
        %v1003 = vadd.f32 0.0, %v1002
        %v1004 = vpop.f32.mrf.mxu0
        %v1005 = vpop.f32.mrf.mxu0
        %v1006 = vadd.f32 0.0, %v1005
        %v1007 = vpop.f32.mrf.mxu0
        %1008 = vmatprep.mubr.bf16.mxu0 0
        %1009 = vmatmul.mubr.bf16.gmra.mxu0 %v928
        %v1010 = vpop.f32.mrf.mxu0
        %v1011 = vadd.f32 0.0, %v1010
        %v1012 = vpop.f32.mrf.mxu0
        %v1013 = vpop.f32.mrf.mxu0
        %v1014 = vadd.f32 0.0, %v1013
        %v1015 = vpop.f32.mrf.mxu0
        %1016 = vmatprep.mubr.bf16.mxu0 0
        %1017 = vmatmul.mubr.bf16.gmra.mxu0 %v931
        %v1018 = vpop.f32.mrf.mxu0
        %v1019 = vadd.f32 0.0, %v1018
        %v1020 = vpop.f32.mrf.mxu0
        %v1021 = vpop.f32.mrf.mxu0
        %v1022 = vadd.f32 0.0, %v1021
        %v1023 = vpop.f32.mrf.mxu0
        %1024 = vmatprep.mubr.bf16.mxu0 0
        %1025 = vmatmul.mubr.bf16.gmra.mxu0 %v934
        %v1026 = vpop.f32.mrf.mxu0
        %v1027 = vadd.f32 0.0, %v1026
        %v1028 = vpop.f32.mrf.mxu0
        %v1029 = vpop.f32.mrf.mxu0
        %v1030 = vadd.f32 0.0, %v1029
        %v1031 = vpop.f32.mrf.mxu0
        %1032 = vdwg.mxu0
        %1033 = vmax.xlane.f32.xlu0 %v971
        %v1034 = vpop.xlane.xlu0 %1033
        %1035 = vmax.xlane.f32.xlu0 %v974
        %v1036 = vpop.xlane.xlu0 %1035
        %1037 = vmax.xlane.f32.xlu0 %v979
        %v1038 = vpop.xlane.xlu0 %1037
        %1039 = vmax.xlane.f32.xlu0 %v982
        %v1040 = vpop.xlane.xlu0 %1039
        %1041 = vmax.xlane.f32.xlu0 %v987
        %v1042 = vpop.xlane.xlu0 %1041
        %1043 = vmax.xlane.f32.xlu0 %v990
        %v1044 = vpop.xlane.xlu0 %1043
        %1045 = vmax.xlane.f32.xlu0 %v995
        %v1046 = vpop.xlane.xlu0 %1045
        %1047 = vmax.xlane.f32.xlu0 %v998
        %v1048 = vpop.xlane.xlu0 %1047
        %1049 = vmax.xlane.f32.xlu0 %v1003
        %v1050 = vpop.xlane.xlu0 %1049
        %1051 = vmax.xlane.f32.xlu0 %v1006
        %v1052 = vpop.xlane.xlu0 %1051
        %1053 = vmax.xlane.f32.xlu0 %v1011
        %v1054 = vpop.xlane.xlu0 %1053
        %1055 = vmax.xlane.f32.xlu0 %v1014
        %v1056 = vpop.xlane.xlu0 %1055
        %1057 = vmax.xlane.f32.xlu0 %v1019
        %v1058 = vpop.xlane.xlu0 %1057
        %1059 = vmax.xlane.f32.xlu0 %v1022
        %v1060 = vpop.xlane.xlu0 %1059
        %1061 = vmax.xlane.f32.xlu0 %v1027
        %v1062 = vpop.xlane.xlu0 %1061
        %1063 = vmax.xlane.f32.xlu0 %v1030
        %v1064 = vpop.xlane.xlu0 %1063
        %v1065 = vsub.f32 -inf, %v1034
        %v1066 = vsub.f32 -inf, %v1036
        %v1067 = vsub.f32 -inf, %v1038
        %v1068 = vsub.f32 -inf, %v1040
        %v1069 = vsub.f32 -inf, %v1042
        %v1070 = vsub.f32 -inf, %v1044
        %v1071 = vsub.f32 -inf, %v1046
        %v1072 = vsub.f32 -inf, %v1048
        %v1073 = vsub.f32 -inf, %v1050
        %v1074 = vsub.f32 -inf, %v1052
        %v1075 = vsub.f32 -inf, %v1054
        %v1076 = vsub.f32 -inf, %v1056
        %v1077 = vsub.f32 -inf, %v1058
        %v1078 = vsub.f32 -inf, %v1060
        %v1079 = vsub.f32 -inf, %v1062
        %v1080 = vsub.f32 -inf, %v1064
        %v1081 = vmul.f32 %v1065, 1.442695
        %v1082 = vpow.pop %v1081
        %v1083 = vmul.f32 %v1066, 1.442695
        %v1084 = vpow.pop %v1083
        %v1085 = vmul.f32 %v1067, 1.442695
        %v1086 = vpow.pop %v1085
        %v1087 = vmul.f32 %v1068, 1.442695
        %v1088 = vpow.pop %v1087
        %v1089 = vmul.f32 %v1069, 1.442695
        %v1090 = vpow.pop %v1089
        %v1091 = vmul.f32 %v1070, 1.442695
        %v1092 = vpow.pop %v1091
        %v1093 = vmul.f32 %v1071, 1.442695
        %v1094 = vpow.pop %v1093
        %v1095 = vmul.f32 %v1072, 1.442695
        %v1096 = vpow.pop %v1095
        %v1097 = vmul.f32 %v1073, 1.442695
        %v1098 = vpow.pop %v1097
        %v1099 = vmul.f32 %v1074, 1.442695
        %v1100 = vpow.pop %v1099
        %v1101 = vmul.f32 %v1075, 1.442695
        %v1102 = vpow.pop %v1101
        %v1103 = vmul.f32 %v1076, 1.442695
        %v1104 = vpow.pop %v1103
        %v1105 = vmul.f32 %v1077, 1.442695
        %v1106 = vpow.pop %v1105
        %v1107 = vmul.f32 %v1078, 1.442695
        %v1108 = vpow.pop %v1107
        %v1109 = vmul.f32 %v1079, 1.442695
        %v1110 = vpow.pop %v1109
        %v1111 = vmul.f32 %v1080, 1.442695
        %v1112 = vpow.pop %v1111
        %v1113 = vsub.f32 %v971, %v1034
        %v1114 = vsub.f32 %v974, %v1036
        %v1115 = vsub.f32 %v979, %v1038
        %v1116 = vsub.f32 %v982, %v1040
        %v1117 = vsub.f32 %v987, %v1042
        %v1118 = vsub.f32 %v990, %v1044
        %v1119 = vsub.f32 %v995, %v1046
        %v1120 = vsub.f32 %v998, %v1048
        %v1121 = vsub.f32 %v1003, %v1050
        %v1122 = vsub.f32 %v1006, %v1052
        %v1123 = vsub.f32 %v1011, %v1054
        %v1124 = vsub.f32 %v1014, %v1056
        %v1125 = vsub.f32 %v1019, %v1058
        %v1126 = vsub.f32 %v1022, %v1060
        %v1127 = vsub.f32 %v1027, %v1062
        %v1128 = vsub.f32 %v1030, %v1064
        %v1129 = vmul.f32 %v1113, 1.442695
        %v1130 = vpow.pop %v1129
        %v1131 = vmul.f32 %v1114, 1.442695
        %v1132 = vpow.pop %v1131
        %v1133 = vmul.f32 %v1115, 1.442695
        %v1134 = vpow.pop %v1133
        %v1135 = vmul.f32 %v1116, 1.442695
        %v1136 = vpow.pop %v1135
        %v1137 = vmul.f32 %v1117, 1.442695
        %v1138 = vpow.pop %v1137
        %v1139 = vmul.f32 %v1118, 1.442695
        %v1140 = vpow.pop %v1139
        %v1141 = vmul.f32 %v1119, 1.442695
        %v1142 = vpow.pop %v1141
        %v1143 = vmul.f32 %v1120, 1.442695
        %v1144 = vpow.pop %v1143
        %v1145 = vmul.f32 %v1121, 1.442695
        %v1146 = vpow.pop %v1145
        %v1147 = vmul.f32 %v1122, 1.442695
        %v1148 = vpow.pop %v1147
        %v1149 = vmul.f32 %v1123, 1.442695
        %v1150 = vpow.pop %v1149
        %v1151 = vmul.f32 %v1124, 1.442695
        %v1152 = vpow.pop %v1151
        %v1153 = vmul.f32 %v1125, 1.442695
        %v1154 = vpow.pop %v1153
        %v1155 = vmul.f32 %v1126, 1.442695
        %v1156 = vpow.pop %v1155
        %v1157 = vmul.f32 %v1127, 1.442695
        %v1158 = vpow.pop %v1157
        %v1159 = vmul.f32 %v1128, 1.442695
        %v1160 = vpow.pop %v1159
        %v1161 = vmul.f32 %v1082, 0.0
        %v1162 = vmul.f32 %v1084, 0.0
        %v1163 = vmul.f32 %v1086, 0.0
        %v1164 = vmul.f32 %v1088, 0.0
        %v1165 = vmul.f32 %v1090, 0.0
        %v1166 = vmul.f32 %v1092, 0.0
        %v1167 = vmul.f32 %v1094, 0.0
        %v1168 = vmul.f32 %v1096, 0.0
        %v1169 = vmul.f32 %v1098, 0.0
        %v1170 = vmul.f32 %v1100, 0.0
        %v1171 = vmul.f32 %v1102, 0.0
        %v1172 = vmul.f32 %v1104, 0.0
        %v1173 = vmul.f32 %v1106, 0.0
        %v1174 = vmul.f32 %v1108, 0.0
        %v1175 = vmul.f32 %v1110, 0.0
        %v1176 = vmul.f32 %v1112, 0.0
        %1177 = vadd.xlane.f32.xlu0 %v1130
        %v1178 = vpop.xlane.xlu0 %1177
        %1179 = vadd.xlane.f32.xlu0 %v1132
        %v1180 = vpop.xlane.xlu0 %1179
        %1181 = vadd.xlane.f32.xlu0 %v1134
        %v1182 = vpop.xlane.xlu0 %1181
        %1183 = vadd.xlane.f32.xlu0 %v1136
        %v1184 = vpop.xlane.xlu0 %1183
        %1185 = vadd.xlane.f32.xlu0 %v1138
        %v1186 = vpop.xlane.xlu0 %1185
        %1187 = vadd.xlane.f32.xlu0 %v1140
        %v1188 = vpop.xlane.xlu0 %1187
        %1189 = vadd.xlane.f32.xlu0 %v1142
        %v1190 = vpop.xlane.xlu0 %1189
        %1191 = vadd.xlane.f32.xlu0 %v1144
        %v1192 = vpop.xlane.xlu0 %1191
        %1193 = vadd.xlane.f32.xlu0 %v1146
        %v1194 = vpop.xlane.xlu0 %1193
        %1195 = vadd.xlane.f32.xlu0 %v1148
        %v1196 = vpop.xlane.xlu0 %1195
        %1197 = vadd.xlane.f32.xlu0 %v1150
        %v1198 = vpop.xlane.xlu0 %1197
        %1199 = vadd.xlane.f32.xlu0 %v1152
        %v1200 = vpop.xlane.xlu0 %1199
        %1201 = vadd.xlane.f32.xlu0 %v1154
        %v1202 = vpop.xlane.xlu0 %1201
        %1203 = vadd.xlane.f32.xlu0 %v1156
        %v1204 = vpop.xlane.xlu0 %1203
        %1205 = vadd.xlane.f32.xlu0 %v1158
        %v1206 = vpop.xlane.xlu0 %1205
        %1207 = vadd.xlane.f32.xlu0 %v1160
        %v1208 = vpop.xlane.xlu0 %1207
        %v1209 = vadd.f32 %v1161, %v1178
        %v1210 = vadd.f32 %v1162, %v1180
        %v1211 = vadd.f32 %v1163, %v1182
        %v1212 = vadd.f32 %v1164, %v1184
        %v1213 = vadd.f32 %v1165, %v1186
        %v1214 = vadd.f32 %v1166, %v1188
        %v1215 = vadd.f32 %v1167, %v1190
        %v1216 = vadd.f32 %v1168, %v1192
        %v1217 = vadd.f32 %v1169, %v1194
        %v1218 = vadd.f32 %v1170, %v1196
        %v1219 = vadd.f32 %v1171, %v1198
        %v1220 = vadd.f32 %v1172, %v1200
        %v1221 = vadd.f32 %v1173, %v1202
        %v1222 = vadd.f32 %v1174, %v1204
        %v1223 = vadd.f32 %v1175, %v1206
        %v1224 = vadd.f32 %v1176, %v1208
        %v1225 = vpack.c.bf16 %v1132, %v1130
        %v1226 = vpack.c.bf16 %v1136, %v1134
        %v1227 = vpack.c.bf16 %v1140, %v1138
        %v1228 = vpack.c.bf16 %v1144, %v1142
        %v1229 = vpack.c.bf16 %v1148, %v1146
        %v1230 = vpack.c.bf16 %v1152, %v1150
        %v1231 = vpack.c.bf16 %v1156, %v1154
        %v1232 = vpack.c.bf16 %v1160, %v1158
        %1233 = vmatprep.subr.bf16.mxu0 0
        %1234 = vmatpush1.bf16.xpose.msra.mxu0 0
        %1235 = vmatprep.subr.bf16.mxu0 0
        %1236 = vmatpush1.bf16.xpose.msra.mxu0 0
        %1237 = vmatprep.subr.bf16.mxu0 0
        %1238 = vmatpush1.bf16.xpose.msra.mxu0 0
        %1239 = vmatprep.subr.bf16.mxu0 0
        %1240 = vmatpush1.bf16.xpose.msra.mxu0 0
        %1241 = vmatprep.subr.bf16.mxu0 0
        %1242 = vmatpush1.bf16.xpose.msra.mxu0 0
        %1243 = vmatprep.subr.bf16.mxu0 0
        %1244 = vmatpush1.bf16.xpose.msra.mxu0 0
        %1245 = vmatprep.subr.bf16.mxu0 0
        %1246 = vmatpush1.bf16.xpose.msra.mxu0 0
        %1247 = vmatprep.subr.bf16.mxu0 0
        %1248 = vmatpush1.bf16.xpose.msra.mxu0 %v399
        %1249 = vmatprep.subr.bf16.mxu0 0
        %1250 = vmatpush2.bf16.xpose.msra.mxu0 0
        %1251 = vmatprep.subr.bf16.mxu0 0
        %1252 = vmatpush2.bf16.xpose.msra.mxu0 0
        %1253 = vmatprep.subr.bf16.mxu0 0
        %1254 = vmatpush2.bf16.xpose.msra.mxu0 0
        %1255 = vmatprep.subr.bf16.mxu0 0
        %1256 = vmatpush2.bf16.xpose.msra.mxu0 0
        %1257 = vmatprep.subr.bf16.mxu0 0
        %1258 = vmatpush2.bf16.xpose.msra.mxu0 0
        %1259 = vmatprep.subr.bf16.mxu0 0
        %1260 = vmatpush2.bf16.xpose.msra.mxu0 0
        %1261 = vmatprep.subr.bf16.mxu0 0
        %1262 = vmatpush2.bf16.xpose.msra.mxu0 0
        %1263 = vmatprep.subr.bf16.mxu0 0
        %1264 = vmatpush2.bf16.xpose.msra.mxu0 0
        %1265 = vmatprep.mubr.bf16.mxu0 0
        %1266 = vmatmul.mubr.bf16.gmra.mxu0 %v1225
        %v1267 = vpop.f32.mrf.mxu0
        %v1268 = vadd.f32 0.0, %v1267
        %v1269 = vpop.f32.mrf.mxu0
        %v1270 = vpop.f32.mrf.mxu0
        %v1271 = vadd.f32 0.0, %v1270
        %v1272 = vpop.f32.mrf.mxu0
        %1273 = vmatprep.mubr.bf16.mxu0 0
        %1274 = vmatmul.mubr.bf16.gmra.mxu0 %v1226
        %v1275 = vpop.f32.mrf.mxu0
        %v1276 = vadd.f32 0.0, %v1275
        %v1277 = vpop.f32.mrf.mxu0
        %v1278 = vpop.f32.mrf.mxu0
        %v1279 = vadd.f32 0.0, %v1278
        %v1280 = vpop.f32.mrf.mxu0
        %1281 = vmatprep.mubr.bf16.mxu0 0
        %1282 = vmatmul.mubr.bf16.gmra.mxu0 %v1227
        %v1283 = vpop.f32.mrf.mxu0
        %v1284 = vadd.f32 0.0, %v1283
        %v1285 = vpop.f32.mrf.mxu0
        %v1286 = vpop.f32.mrf.mxu0
        %v1287 = vadd.f32 0.0, %v1286
        %v1288 = vpop.f32.mrf.mxu0
        %1289 = vmatprep.mubr.bf16.mxu0 0
        %1290 = vmatmul.mubr.bf16.gmra.mxu0 %v1228
        %v1291 = vpop.f32.mrf.mxu0
        %v1292 = vadd.f32 0.0, %v1291
        %v1293 = vpop.f32.mrf.mxu0
        %v1294 = vpop.f32.mrf.mxu0
        %v1295 = vadd.f32 0.0, %v1294
        %v1296 = vpop.f32.mrf.mxu0
        %1297 = vmatprep.mubr.bf16.mxu0 0
        %1298 = vmatmul.mubr.bf16.gmra.mxu0 %v1229
        %v1299 = vpop.f32.mrf.mxu0
        %v1300 = vadd.f32 0.0, %v1299
        %v1301 = vpop.f32.mrf.mxu0
        %v1302 = vpop.f32.mrf.mxu0
        %v1303 = vadd.f32 0.0, %v1302
        %v1304 = vpop.f32.mrf.mxu0
        %1305 = vmatprep.mubr.bf16.mxu0 0
        %1306 = vmatmul.mubr.bf16.gmra.mxu0 %v1230
        %v1307 = vpop.f32.mrf.mxu0
        %v1308 = vadd.f32 0.0, %v1307
        %v1309 = vpop.f32.mrf.mxu0
        %v1310 = vpop.f32.mrf.mxu0
        %v1311 = vadd.f32 0.0, %v1310
        %v1312 = vpop.f32.mrf.mxu0
        %1313 = vmatprep.mubr.bf16.mxu0 0
        %1314 = vmatmul.mubr.bf16.gmra.mxu0 %v1231
        %v1315 = vpop.f32.mrf.mxu0
        %v1316 = vadd.f32 0.0, %v1315
        %v1317 = vpop.f32.mrf.mxu0
        %v1318 = vpop.f32.mrf.mxu0
        %v1319 = vadd.f32 0.0, %v1318
        %v1320 = vpop.f32.mrf.mxu0
        %1321 = vmatprep.mubr.bf16.mxu0 0
        %1322 = vmatmul.mubr.bf16.gmra.mxu0 %v1232
        %v1323 = vpop.f32.mrf.mxu0
        %v1324 = vadd.f32 0.0, %v1323
        %v1325 = vpop.f32.mrf.mxu0
        %v1326 = vpop.f32.mrf.mxu0
        %v1327 = vadd.f32 0.0, %v1326
        %v1328 = vpop.f32.mrf.mxu0
        %1329 = vdwg.mxu0
        %v1330 = vadd.f32 %v1161, %v1268
        %v1331 = vadd.f32 %v1162, %v1271
        %v1332 = vadd.f32 %v1163, %v1276
        %v1333 = vadd.f32 %v1164, %v1279
        %v1334 = vadd.f32 %v1165, %v1284
        %v1335 = vadd.f32 %v1166, %v1287
        %v1336 = vadd.f32 %v1167, %v1292
        %v1337 = vadd.f32 %v1168, %v1295
        %v1338 = vadd.f32 %v1169, %v1300
        %v1339 = vadd.f32 %v1170, %v1303
        %v1340 = vadd.f32 %v1171, %v1308
        %v1341 = vadd.f32 %v1172, %v1311
        %v1342 = vadd.f32 %v1173, %v1316
        %v1343 = vadd.f32 %v1174, %v1319
        %v1344 = vadd.f32 %v1175, %v1324
        %v1345 = vadd.f32 %v1176, %v1327
        %v1346 = vrcp.pop %v1209
        %v1347 = vrcp.pop %v1210
        %v1348 = vrcp.pop %v1211
        %v1349 = vrcp.pop %v1212
        %v1350 = vrcp.pop %v1213
        %v1351 = vrcp.pop %v1214
        %v1352 = vrcp.pop %v1215
        %v1353 = vrcp.pop %v1216
        %v1354 = vrcp.pop %v1217
        %v1355 = vrcp.pop %v1218
        %v1356 = vrcp.pop %v1219
        %v1357 = vrcp.pop %v1220
        %v1358 = vrcp.pop %v1221
        %v1359 = vrcp.pop %v1222
        %v1360 = vrcp.pop %v1223
        %v1361 = vrcp.pop %v1224
        %v1362 = vmul.f32 %v1330, %v1346
        %v1363 = vmul.f32 %v1331, %v1347
        %v1364 = vmul.f32 %v1332, %v1348
        %v1365 = vmul.f32 %v1333, %v1349
        %v1366 = vmul.f32 %v1334, %v1350
        %v1367 = vmul.f32 %v1335, %v1351
        %v1368 = vmul.f32 %v1336, %v1352
        %v1369 = vmul.f32 %v1337, %v1353
        %v1370 = vmul.f32 %v1338, %v1354
        %v1371 = vmul.f32 %v1339, %v1355
        %v1372 = vmul.f32 %v1340, %v1356
        %v1373 = vmul.f32 %v1341, %v1357
        %v1374 = vmul.f32 %v1342, %v1358
        %v1375 = vmul.f32 %v1343, %v1359
        %v1376 = vmul.f32 %v1344, %v1360
        %v1377 = vmul.f32 %v1345, %v1361
        %v1378 = vpack.c.bf16 %v1363, %v1362
        %v1379 = vpack.c.bf16 %v1365, %v1364
        %v1380 = vpack.c.bf16 %v1367, %v1366
        %v1381 = vpack.c.bf16 %v1369, %v1368
        %v1382 = vpack.c.bf16 %v1371, %v1370
        %v1383 = vpack.c.bf16 %v1373, %v1372
        %v1384 = vpack.c.bf16 %v1375, %v1374
        %v1385 = vpack.c.bf16 %v1377, %v1376
        %s1386 = scalar_lea.vmem %s2, 16
        %v1387 = vld [vmem:[%s1386] sm:$0xf]
        %v1388 = vld [vmem:[%s1386 + $0x4] sm:$0xf]
        %v1389 = vld [vmem:[%s1386 + $0x8] sm:$0xf]
        %v1390 = vld [vmem:[%s1386 + $0xc] sm:$0xf]
        %v1395 = vunpack.c.l.b16 %v1387
        %v1396 = vunpack.c.l.b16 %v1388
        %v1397 = vunpack.c.l.b16 %v1389
        %v1398 = vunpack.c.l.b16 %v1390
        %v1399 = vpack.c.b16 %v1396, %v1395
        %v1400 = vpack.c.b16 %v1398, %v1397
        %v1402 = vsel %vm417, %v1399, 0
        %v1405 = vsel %vm417, %v1400, 0
        %v1408 = vsel %vm417, %v1378, 0
        %v1411 = vsel %vm417, %v1379, 0
        %v1414 = vsel %vm417, %v1380, 0
        %v1417 = vsel %vm417, %v1381, 0
        %v1420 = vsel %vm417, %v1382, 0
        %v1423 = vsel %vm417, %v1383, 0
        %v1426 = vsel %vm417, %v1384, 0
        %v1429 = vsel %vm417, %v1385, 0
        %1431 = vmatprep.subr.bf16.mxu0 0
        %1432 = vmatpush1.bf16.xpose.msra.mxu0 %v1429
        %1433 = vmatprep.subr.bf16.mxu0 0
        %1434 = vmatpush1.bf16.xpose.msra.mxu0 %v1426
        %1435 = vmatprep.subr.bf16.mxu0 0
        %1436 = vmatpush1.bf16.xpose.msra.mxu0 %v1423
        %1437 = vmatprep.subr.bf16.mxu0 0
        %1438 = vmatpush1.bf16.xpose.msra.mxu0 %v1420
        %1439 = vmatprep.subr.bf16.mxu0 0
        %1440 = vmatpush1.bf16.xpose.msra.mxu0 %v1417
        %1441 = vmatprep.subr.bf16.mxu0 0
        %1442 = vmatpush1.bf16.xpose.msra.mxu0 %v1414
        %1443 = vmatprep.subr.bf16.mxu0 0
        %1444 = vmatpush1.bf16.xpose.msra.mxu0 %v1411
        %1445 = vmatprep.subr.bf16.mxu0 0
        %1446 = vmatpush1.bf16.xpose.msra.mxu0 %v1408
        %1447 = vmatprep.subr.bf16.mxu0 0
        %1448 = vmatpush2.bf16.xpose.msra.mxu0 0
        %1449 = vmatprep.subr.bf16.mxu0 0
        %1450 = vmatpush2.bf16.xpose.msra.mxu0 0
        %1451 = vmatprep.subr.bf16.mxu0 0
        %1452 = vmatpush2.bf16.xpose.msra.mxu0 0
        %1453 = vmatprep.subr.bf16.mxu0 0
        %1454 = vmatpush2.bf16.xpose.msra.mxu0 0
        %1455 = vmatprep.subr.bf16.mxu0 0
        %1456 = vmatpush2.bf16.xpose.msra.mxu0 0
        %1457 = vmatprep.subr.bf16.mxu0 0
        %1458 = vmatpush2.bf16.xpose.msra.mxu0 0
        %1459 = vmatprep.subr.bf16.mxu0 0
        %1460 = vmatpush2.bf16.xpose.msra.mxu0 0
        %1461 = vmatprep.subr.bf16.mxu0 0
        %1462 = vmatpush2.bf16.xpose.msra.mxu0 0
        %1463 = vmatprep.mubr.bf16.mxu0 0
        %1464 = vmatmul.mubr.bf16.gmra.mxu0 %v1402
        %v1465 = vpop.f32.mrf.mxu0
        %v1466 = vadd.f32 0.0, %v1465
        %v1467 = vpop.f32.mrf.mxu0
        %v1468 = vpop.f32.mrf.mxu0
        %v1469 = vadd.f32 0.0, %v1468
        %v1470 = vpop.f32.mrf.mxu0
        %1471 = vmatprep.mubr.bf16.mxu0 0
        %1472 = vmatmul.mubr.bf16.gmra.mxu0 %v1405
        %v1473 = vpop.f32.mrf.mxu0
        %v1474 = vadd.f32 0.0, %v1473
        %v1475 = vpop.f32.mrf.mxu0
        %v1476 = vpop.f32.mrf.mxu0
        %v1477 = vadd.f32 0.0, %v1476
        %v1478 = vpop.f32.mrf.mxu0
        %1479 = vdwg.mxu0
        %v1484 = vunpack.c.l.b16 %v892
        %v1485 = vunpack.c.l.b16 %v893
        %v1486 = vunpack.c.l.b16 %v894
        %v1487 = vunpack.c.l.b16 %v895
        %v1488 = vpack.c.b16 %v1485, %v1484
        %v1489 = vpack.c.b16 %v1487, %v1486
        %v1491 = vsel %vm417, %v1488, 0
        %v1494 = vsel %vm417, %v1489, 0
        %v1497 = vsel %vm417, %v884, 0
        %v1500 = vsel %vm417, %v885, 0
        %v1503 = vsel %vm417, %v886, 0
        %v1506 = vsel %vm417, %v887, 0
        %v1509 = vsel %vm417, %v888, 0
        %v1512 = vsel %vm417, %v889, 0
        %v1515 = vsel %vm417, %v890, 0
        %v1518 = vsel %vm417, %v891, 0
        %1520 = vmatprep.subr.bf16.mxu0 0
        %1521 = vmatpush1.bf16.xpose.msra.mxu0 %v1518
        %1522 = vmatprep.subr.bf16.mxu0 0
        %1523 = vmatpush1.bf16.xpose.msra.mxu0 %v1515
        %1524 = vmatprep.subr.bf16.mxu0 0
        %1525 = vmatpush1.bf16.xpose.msra.mxu0 %v1512
        %1526 = vmatprep.subr.bf16.mxu0 0
        %1527 = vmatpush1.bf16.xpose.msra.mxu0 %v1509
        %1528 = vmatprep.subr.bf16.mxu0 0
        %1529 = vmatpush1.bf16.xpose.msra.mxu0 %v1506
        %1530 = vmatprep.subr.bf16.mxu0 0
        %1531 = vmatpush1.bf16.xpose.msra.mxu0 %v1503
        %1532 = vmatprep.subr.bf16.mxu0 0
        %1533 = vmatpush1.bf16.xpose.msra.mxu0 %v1500
        %1534 = vmatprep.subr.bf16.mxu0 0
        %1535 = vmatpush1.bf16.xpose.msra.mxu0 %v1497
        %1536 = vmatprep.subr.bf16.mxu0 0
        %1537 = vmatpush2.bf16.xpose.msra.mxu0 0
        %1538 = vmatprep.subr.bf16.mxu0 0
        %1539 = vmatpush2.bf16.xpose.msra.mxu0 0
        %1540 = vmatprep.subr.bf16.mxu0 0
        %1541 = vmatpush2.bf16.xpose.msra.mxu0 0
        %1542 = vmatprep.subr.bf16.mxu0 0
        %1543 = vmatpush2.bf16.xpose.msra.mxu0 0
        %1544 = vmatprep.subr.bf16.mxu0 0
        %1545 = vmatpush2.bf16.xpose.msra.mxu0 0
        %1546 = vmatprep.subr.bf16.mxu0 0
        %1547 = vmatpush2.bf16.xpose.msra.mxu0 0
        %1548 = vmatprep.subr.bf16.mxu0 0
        %1549 = vmatpush2.bf16.xpose.msra.mxu0 0
        %1550 = vmatprep.subr.bf16.mxu0 0
        %1551 = vmatpush2.bf16.xpose.msra.mxu0 0
        %1552 = vmatprep.mubr.bf16.mxu0 0
        %1553 = vmatmul.mubr.bf16.gmra.mxu0 %v1491
        %v1554 = vpop.f32.mrf.mxu0
        %v1555 = vadd.f32 %v1466, %v1554
        %v1556 = vpop.f32.mrf.mxu0
        %v1557 = vpop.f32.mrf.mxu0
        %v1558 = vadd.f32 %v1469, %v1557
        %v1559 = vpop.f32.mrf.mxu0
        %1560 = vmatprep.mubr.bf16.mxu0 0
        %1561 = vmatmul.mubr.bf16.gmra.mxu0 %v1494
        %v1562 = vpop.f32.mrf.mxu0
        %v1563 = vadd.f32 %v1474, %v1562
        %v1564 = vpop.f32.mrf.mxu0
        %v1565 = vpop.f32.mrf.mxu0
        %v1566 = vadd.f32 %v1477, %v1565
        %v1567 = vpop.f32.mrf.mxu0
        %1568 = vdwg.mxu0
        %v1569 = vld [vmem:[%s3] sm:$0xff]
        %v1570 = vld [vmem:[%s3 + $0x8] sm:$0xff]
        %v1571 = vld [vmem:[%s3 + $0x10] sm:$0xff]
        %v1572 = vld [vmem:[%s3 + $0x18] sm:$0xff]
        %1574 = vset.pattern.permute.xlu0 0
        %1575 = vperm.xlu0 %1574, %v1569
        %v1576 = vpop.permute.xlu0 %1575
        %1579 = vset.pattern.permute.xlu0 0
        %1580 = vperm.xlu0 %1579, %v1570
        %v1581 = vpop.permute.xlu0 %1580
        %1584 = vset.pattern.permute.xlu0 0
        %1585 = vperm.xlu0 %1584, %v1571
        %v1586 = vpop.permute.xlu0 %1585
        %1589 = vset.pattern.permute.xlu0 0
        %1590 = vperm.xlu0 %1589, %v1572
        %v1591 = vpop.permute.xlu0 %1590
        %v1593 = vadd.f32 %v1555, %v1576
        %v1594 = vadd.f32 %v1558, %v1581
        %v1595 = vadd.f32 %v1563, %v1586
        %v1596 = vadd.f32 %v1566, %v1591
        %1597 = vst [vmem:[%s193] sm:$0xff] %v1593
        %1598 = vst [vmem:[%s193 + $0x8] sm:$0xff] %v1594
        %1599 = vst [vmem:[%s193 + $0x10] sm:$0xff] %v1595
        %1600 = vst [vmem:[%s193 + $0x18] sm:$0xff] %v1596
        %1601 = vxpose.xlu0.c.b16.start [1/8] %v390, 128
        %1602 = vxpose.xlu0.c.b16.cont [2/8] 0, 128
        %1603 = vxpose.xlu0.c.b16.cont [3/8] 0, 128
        %1604 = vxpose.xlu0.c.b16.cont [4/8] 0, 128
        %1605 = vxpose.xlu0.c.b16.cont [5/8] 0, 128
        %1606 = vxpose.xlu0.c.b16.cont [6/8] 0, 128
        %1607 = vxpose.xlu0.c.b16.cont [7/8] 0, 128
        %1608 = vxpose.xlu0.c.b16.end [8/8] 0, 128
        %v1609 = vpop.trf.xlu0
        %v1610 = vpop.trf.xlu0
        %v1611 = vpop.trf.xlu0
        %v1612 = vpop.trf.xlu0
        %v1613 = vpop.trf.xlu0
        %v1614 = vpop.trf.xlu0
        %v1615 = vpop.trf.xlu0
        %v1616 = vpop.trf.xlu0
        %v1618 = vsel %vm417, %v1609, 0
        %v1621 = vsel %vm417, %v1610, 0
        %v1624 = vsel %vm417, %v1611, 0
        %v1627 = vsel %vm417, %v1612, 0
        %v1630 = vsel %vm417, %v1613, 0
        %v1633 = vsel %vm417, %v1614, 0
        %v1636 = vsel %vm417, %v1615, 0
        %v1639 = vsel %vm417, %v1616, 0
        %1641 = vmatprep.subr.bf16.mxu0 0
        %1642 = vmatpush1.bf16.msra.mxu0 0
        %1643 = vmatprep.subr.bf16.mxu0 0
        %1644 = vmatpush1.bf16.msra.mxu0 0
        %1645 = vmatprep.subr.bf16.mxu0 0
        %1646 = vmatpush1.bf16.msra.mxu0 0
        %1647 = vmatprep.subr.bf16.mxu0 0
        %1648 = vmatpush1.bf16.msra.mxu0 0
        %1649 = vmatprep.subr.bf16.mxu0 0
        %1650 = vmatpush1.bf16.msra.mxu0 0
        %1651 = vmatprep.subr.bf16.mxu0 0
        %1652 = vmatpush1.bf16.msra.mxu0 0
        %1653 = vmatprep.subr.bf16.mxu0 0
        %1654 = vmatpush1.bf16.msra.mxu0 0
        %1655 = vmatprep.subr.bf16.mxu0 0
        %1656 = vmatpush1.bf16.msra.mxu0 %v394
        %1657 = vmatprep.subr.bf16.mxu0 0
        %1658 = vmatpush2.bf16.msra.mxu0 0
        %1659 = vmatprep.subr.bf16.mxu0 0
        %1660 = vmatpush2.bf16.msra.mxu0 0
        %1661 = vmatprep.subr.bf16.mxu0 0
        %1662 = vmatpush2.bf16.msra.mxu0 0
        %1663 = vmatprep.subr.bf16.mxu0 0
        %1664 = vmatpush2.bf16.msra.mxu0 0
        %1665 = vmatprep.subr.bf16.mxu0 0
        %1666 = vmatpush2.bf16.msra.mxu0 0
        %1667 = vmatprep.subr.bf16.mxu0 0
        %1668 = vmatpush2.bf16.msra.mxu0 0
        %1669 = vmatprep.subr.bf16.mxu0 0
        %1670 = vmatpush2.bf16.msra.mxu0 0
        %1671 = vmatprep.subr.bf16.mxu0 0
        %1672 = vmatpush2.bf16.msra.mxu0 0
        %1673 = vmatprep.mubr.bf16.mxu0 0
        %1674 = vmatmul.mubr.bf16.gmra.mxu0 %v1618
        %v1675 = vpop.f32.mrf.mxu0
        %v1676 = vadd.f32 0.0, %v1675
        %v1677 = vpop.f32.mrf.mxu0
        %v1678 = vpop.f32.mrf.mxu0
        %v1679 = vadd.f32 0.0, %v1678
        %v1680 = vpop.f32.mrf.mxu0
        %1681 = vmatprep.mubr.bf16.mxu0 0
        %1682 = vmatmul.mubr.bf16.gmra.mxu0 %v1621
        %v1683 = vpop.f32.mrf.mxu0
        %v1684 = vadd.f32 0.0, %v1683
        %v1685 = vpop.f32.mrf.mxu0
        %v1686 = vpop.f32.mrf.mxu0
        %v1687 = vadd.f32 0.0, %v1686
        %v1688 = vpop.f32.mrf.mxu0
        %1689 = vmatprep.mubr.bf16.mxu0 0
        %1690 = vmatmul.mubr.bf16.gmra.mxu0 %v1624
        %v1691 = vpop.f32.mrf.mxu0
        %v1692 = vadd.f32 0.0, %v1691
        %v1693 = vpop.f32.mrf.mxu0
        %v1694 = vpop.f32.mrf.mxu0
        %v1695 = vadd.f32 0.0, %v1694
        %v1696 = vpop.f32.mrf.mxu0
        %1697 = vmatprep.mubr.bf16.mxu0 0
        %1698 = vmatmul.mubr.bf16.gmra.mxu0 %v1627
        %v1699 = vpop.f32.mrf.mxu0
        %v1700 = vadd.f32 0.0, %v1699
        %v1701 = vpop.f32.mrf.mxu0
        %v1702 = vpop.f32.mrf.mxu0
        %v1703 = vadd.f32 0.0, %v1702
        %v1704 = vpop.f32.mrf.mxu0
        %1705 = vmatprep.mubr.bf16.mxu0 0
        %1706 = vmatmul.mubr.bf16.gmra.mxu0 %v1630
        %v1707 = vpop.f32.mrf.mxu0
        %v1708 = vadd.f32 0.0, %v1707
        %v1709 = vpop.f32.mrf.mxu0
        %v1710 = vpop.f32.mrf.mxu0
        %v1711 = vadd.f32 0.0, %v1710
        %v1712 = vpop.f32.mrf.mxu0
        %1713 = vmatprep.mubr.bf16.mxu0 0
        %1714 = vmatmul.mubr.bf16.gmra.mxu0 %v1633
        %v1715 = vpop.f32.mrf.mxu0
        %v1716 = vadd.f32 0.0, %v1715
        %v1717 = vpop.f32.mrf.mxu0
        %v1718 = vpop.f32.mrf.mxu0
        %v1719 = vadd.f32 0.0, %v1718
        %v1720 = vpop.f32.mrf.mxu0
        %1721 = vmatprep.mubr.bf16.mxu0 0
        %1722 = vmatmul.mubr.bf16.gmra.mxu0 %v1636
        %v1723 = vpop.f32.mrf.mxu0
        %v1724 = vadd.f32 0.0, %v1723
        %v1725 = vpop.f32.mrf.mxu0
        %v1726 = vpop.f32.mrf.mxu0
        %v1727 = vadd.f32 0.0, %v1726
        %v1728 = vpop.f32.mrf.mxu0
        %1729 = vmatprep.mubr.bf16.mxu0 0
        %1730 = vmatmul.mubr.bf16.gmra.mxu0 %v1639
        %v1731 = vpop.f32.mrf.mxu0
        %v1732 = vadd.f32 0.0, %v1731
        %v1733 = vpop.f32.mrf.mxu0
        %v1734 = vpop.f32.mrf.mxu0
        %v1735 = vadd.f32 0.0, %v1734
        %v1736 = vpop.f32.mrf.mxu0
        %1737 = vdwg.mxu0
        %1738 = vmax.xlane.f32.xlu0 %v1676
        %v1739 = vpop.xlane.xlu0 %1738
        %1740 = vmax.xlane.f32.xlu0 %v1679
        %v1741 = vpop.xlane.xlu0 %1740
        %1742 = vmax.xlane.f32.xlu0 %v1684
        %v1743 = vpop.xlane.xlu0 %1742
        %1744 = vmax.xlane.f32.xlu0 %v1687
        %v1745 = vpop.xlane.xlu0 %1744
        %1746 = vmax.xlane.f32.xlu0 %v1692
        %v1747 = vpop.xlane.xlu0 %1746
        %1748 = vmax.xlane.f32.xlu0 %v1695
        %v1749 = vpop.xlane.xlu0 %1748
        %1750 = vmax.xlane.f32.xlu0 %v1700
        %v1751 = vpop.xlane.xlu0 %1750
        %1752 = vmax.xlane.f32.xlu0 %v1703
        %v1753 = vpop.xlane.xlu0 %1752
        %1754 = vmax.xlane.f32.xlu0 %v1708
        %v1755 = vpop.xlane.xlu0 %1754
        %1756 = vmax.xlane.f32.xlu0 %v1711
        %v1757 = vpop.xlane.xlu0 %1756
        %1758 = vmax.xlane.f32.xlu0 %v1716
        %v1759 = vpop.xlane.xlu0 %1758
        %1760 = vmax.xlane.f32.xlu0 %v1719
        %v1761 = vpop.xlane.xlu0 %1760
        %1762 = vmax.xlane.f32.xlu0 %v1724
        %v1763 = vpop.xlane.xlu0 %1762
        %1764 = vmax.xlane.f32.xlu0 %v1727
        %v1765 = vpop.xlane.xlu0 %1764
        %1766 = vmax.xlane.f32.xlu0 %v1732
        %v1767 = vpop.xlane.xlu0 %1766
        %1768 = vmax.xlane.f32.xlu0 %v1735
        %v1769 = vpop.xlane.xlu0 %1768
        %v1770 = vsub.f32 -inf, %v1739
        %v1771 = vsub.f32 -inf, %v1741
        %v1772 = vsub.f32 -inf, %v1743
        %v1773 = vsub.f32 -inf, %v1745
        %v1774 = vsub.f32 -inf, %v1747
        %v1775 = vsub.f32 -inf, %v1749
        %v1776 = vsub.f32 -inf, %v1751
        %v1777 = vsub.f32 -inf, %v1753
        %v1778 = vsub.f32 -inf, %v1755
        %v1779 = vsub.f32 -inf, %v1757
        %v1780 = vsub.f32 -inf, %v1759
        %v1781 = vsub.f32 -inf, %v1761
        %v1782 = vsub.f32 -inf, %v1763
        %v1783 = vsub.f32 -inf, %v1765
        %v1784 = vsub.f32 -inf, %v1767
        %v1785 = vsub.f32 -inf, %v1769
        %v1786 = vmul.f32 %v1770, 1.442695
        %v1787 = vpow.pop %v1786
        %v1788 = vmul.f32 %v1771, 1.442695
        %v1789 = vpow.pop %v1788
        %v1790 = vmul.f32 %v1772, 1.442695
        %v1791 = vpow.pop %v1790
        %v1792 = vmul.f32 %v1773, 1.442695
        %v1793 = vpow.pop %v1792
        %v1794 = vmul.f32 %v1774, 1.442695
        %v1795 = vpow.pop %v1794
        %v1796 = vmul.f32 %v1775, 1.442695
        %v1797 = vpow.pop %v1796
        %v1798 = vmul.f32 %v1776, 1.442695
        %v1799 = vpow.pop %v1798
        %v1800 = vmul.f32 %v1777, 1.442695
        %v1801 = vpow.pop %v1800
        %v1802 = vmul.f32 %v1778, 1.442695
        %v1803 = vpow.pop %v1802
        %v1804 = vmul.f32 %v1779, 1.442695
        %v1805 = vpow.pop %v1804
        %v1806 = vmul.f32 %v1780, 1.442695
        %v1807 = vpow.pop %v1806
        %v1808 = vmul.f32 %v1781, 1.442695
        %v1809 = vpow.pop %v1808
        %v1810 = vmul.f32 %v1782, 1.442695
        %v1811 = vpow.pop %v1810
        %v1812 = vmul.f32 %v1783, 1.442695
        %v1813 = vpow.pop %v1812
        %v1814 = vmul.f32 %v1784, 1.442695
        %v1815 = vpow.pop %v1814
        %v1816 = vmul.f32 %v1785, 1.442695
        %v1817 = vpow.pop %v1816
        %v1818 = vsub.f32 %v1676, %v1739
        %v1819 = vsub.f32 %v1679, %v1741
        %v1820 = vsub.f32 %v1684, %v1743
        %v1821 = vsub.f32 %v1687, %v1745
        %v1822 = vsub.f32 %v1692, %v1747
        %v1823 = vsub.f32 %v1695, %v1749
        %v1824 = vsub.f32 %v1700, %v1751
        %v1825 = vsub.f32 %v1703, %v1753
        %v1826 = vsub.f32 %v1708, %v1755
        %v1827 = vsub.f32 %v1711, %v1757
        %v1828 = vsub.f32 %v1716, %v1759
        %v1829 = vsub.f32 %v1719, %v1761
        %v1830 = vsub.f32 %v1724, %v1763
        %v1831 = vsub.f32 %v1727, %v1765
        %v1832 = vsub.f32 %v1732, %v1767
        %v1833 = vsub.f32 %v1735, %v1769
        %v1834 = vmul.f32 %v1818, 1.442695
        %v1835 = vpow.pop %v1834
        %v1836 = vmul.f32 %v1819, 1.442695
        %v1837 = vpow.pop %v1836
        %v1838 = vmul.f32 %v1820, 1.442695
        %v1839 = vpow.pop %v1838
        %v1840 = vmul.f32 %v1821, 1.442695
        %v1841 = vpow.pop %v1840
        %v1842 = vmul.f32 %v1822, 1.442695
        %v1843 = vpow.pop %v1842
        %v1844 = vmul.f32 %v1823, 1.442695
        %v1845 = vpow.pop %v1844
        %v1846 = vmul.f32 %v1824, 1.442695
        %v1847 = vpow.pop %v1846
        %v1848 = vmul.f32 %v1825, 1.442695
        %v1849 = vpow.pop %v1848
        %v1850 = vmul.f32 %v1826, 1.442695
        %v1851 = vpow.pop %v1850
        %v1852 = vmul.f32 %v1827, 1.442695
        %v1853 = vpow.pop %v1852
        %v1854 = vmul.f32 %v1828, 1.442695
        %v1855 = vpow.pop %v1854
        %v1856 = vmul.f32 %v1829, 1.442695
        %v1857 = vpow.pop %v1856
        %v1858 = vmul.f32 %v1830, 1.442695
        %v1859 = vpow.pop %v1858
        %v1860 = vmul.f32 %v1831, 1.442695
        %v1861 = vpow.pop %v1860
        %v1862 = vmul.f32 %v1832, 1.442695
        %v1863 = vpow.pop %v1862
        %v1864 = vmul.f32 %v1833, 1.442695
        %v1865 = vpow.pop %v1864
        %v1866 = vmul.f32 %v1787, 0.0
        %v1867 = vmul.f32 %v1789, 0.0
        %v1868 = vmul.f32 %v1791, 0.0
        %v1869 = vmul.f32 %v1793, 0.0
        %v1870 = vmul.f32 %v1795, 0.0
        %v1871 = vmul.f32 %v1797, 0.0
        %v1872 = vmul.f32 %v1799, 0.0
        %v1873 = vmul.f32 %v1801, 0.0
        %v1874 = vmul.f32 %v1803, 0.0
        %v1875 = vmul.f32 %v1805, 0.0
        %v1876 = vmul.f32 %v1807, 0.0
        %v1877 = vmul.f32 %v1809, 0.0
        %v1878 = vmul.f32 %v1811, 0.0
        %v1879 = vmul.f32 %v1813, 0.0
        %v1880 = vmul.f32 %v1815, 0.0
        %v1881 = vmul.f32 %v1817, 0.0
        %1882 = vadd.xlane.f32.xlu0 %v1835
        %v1883 = vpop.xlane.xlu0 %1882
        %1884 = vadd.xlane.f32.xlu0 %v1837
        %v1885 = vpop.xlane.xlu0 %1884
        %1886 = vadd.xlane.f32.xlu0 %v1839
        %v1887 = vpop.xlane.xlu0 %1886
        %1888 = vadd.xlane.f32.xlu0 %v1841
        %v1889 = vpop.xlane.xlu0 %1888
        %1890 = vadd.xlane.f32.xlu0 %v1843
        %v1891 = vpop.xlane.xlu0 %1890
        %1892 = vadd.xlane.f32.xlu0 %v1845
        %v1893 = vpop.xlane.xlu0 %1892
        %1894 = vadd.xlane.f32.xlu0 %v1847
        %v1895 = vpop.xlane.xlu0 %1894
        %1896 = vadd.xlane.f32.xlu0 %v1849
        %v1897 = vpop.xlane.xlu0 %1896
        %1898 = vadd.xlane.f32.xlu0 %v1851
        %v1899 = vpop.xlane.xlu0 %1898
        %1900 = vadd.xlane.f32.xlu0 %v1853
        %v1901 = vpop.xlane.xlu0 %1900
        %1902 = vadd.xlane.f32.xlu0 %v1855
        %v1903 = vpop.xlane.xlu0 %1902
        %1904 = vadd.xlane.f32.xlu0 %v1857
        %v1905 = vpop.xlane.xlu0 %1904
        %1906 = vadd.xlane.f32.xlu0 %v1859
        %v1907 = vpop.xlane.xlu0 %1906
        %1908 = vadd.xlane.f32.xlu0 %v1861
        %v1909 = vpop.xlane.xlu0 %1908
        %1910 = vadd.xlane.f32.xlu0 %v1863
        %v1911 = vpop.xlane.xlu0 %1910
        %1912 = vadd.xlane.f32.xlu0 %v1865
        %v1913 = vpop.xlane.xlu0 %1912
        %v1914 = vadd.f32 %v1866, %v1883
        %v1915 = vadd.f32 %v1867, %v1885
        %v1916 = vadd.f32 %v1868, %v1887
        %v1917 = vadd.f32 %v1869, %v1889
        %v1918 = vadd.f32 %v1870, %v1891
        %v1919 = vadd.f32 %v1871, %v1893
        %v1920 = vadd.f32 %v1872, %v1895
        %v1921 = vadd.f32 %v1873, %v1897
        %v1922 = vadd.f32 %v1874, %v1899
        %v1923 = vadd.f32 %v1875, %v1901
        %v1924 = vadd.f32 %v1876, %v1903
        %v1925 = vadd.f32 %v1877, %v1905
        %v1926 = vadd.f32 %v1878, %v1907
        %v1927 = vadd.f32 %v1879, %v1909
        %v1928 = vadd.f32 %v1880, %v1911
        %v1929 = vadd.f32 %v1881, %v1913
        %v1930 = vpack.c.bf16 %v1837, %v1835
        %v1931 = vpack.c.bf16 %v1841, %v1839
        %v1932 = vpack.c.bf16 %v1845, %v1843
        %v1933 = vpack.c.bf16 %v1849, %v1847
        %v1934 = vpack.c.bf16 %v1853, %v1851
        %v1935 = vpack.c.bf16 %v1857, %v1855
        %v1936 = vpack.c.bf16 %v1861, %v1859
        %v1937 = vpack.c.bf16 %v1865, %v1863
        %1938 = vmatprep.subr.bf16.mxu0 0
        %1939 = vmatpush1.bf16.xpose.msra.mxu0 0
        %1940 = vmatprep.subr.bf16.mxu0 0
        %1941 = vmatpush1.bf16.xpose.msra.mxu0 0
        %1942 = vmatprep.subr.bf16.mxu0 0
        %1943 = vmatpush1.bf16.xpose.msra.mxu0 0
        %1944 = vmatprep.subr.bf16.mxu0 0
        %1945 = vmatpush1.bf16.xpose.msra.mxu0 0
        %1946 = vmatprep.subr.bf16.mxu0 0
        %1947 = vmatpush1.bf16.xpose.msra.mxu0 0
        %1948 = vmatprep.subr.bf16.mxu0 0
        %1949 = vmatpush1.bf16.xpose.msra.mxu0 0
        %1950 = vmatprep.subr.bf16.mxu0 0
        %1951 = vmatpush1.bf16.xpose.msra.mxu0 0
        %1952 = vmatprep.subr.bf16.mxu0 0
        %1953 = vmatpush1.bf16.xpose.msra.mxu0 %v398
        %1954 = vmatprep.subr.bf16.mxu0 0
        %1955 = vmatpush2.bf16.xpose.msra.mxu0 0
        %1956 = vmatprep.subr.bf16.mxu0 0
        %1957 = vmatpush2.bf16.xpose.msra.mxu0 0
        %1958 = vmatprep.subr.bf16.mxu0 0
        %1959 = vmatpush2.bf16.xpose.msra.mxu0 0
        %1960 = vmatprep.subr.bf16.mxu0 0
        %1961 = vmatpush2.bf16.xpose.msra.mxu0 0
        %1962 = vmatprep.subr.bf16.mxu0 0
        %1963 = vmatpush2.bf16.xpose.msra.mxu0 0
        %1964 = vmatprep.subr.bf16.mxu0 0
        %1965 = vmatpush2.bf16.xpose.msra.mxu0 0
        %1966 = vmatprep.subr.bf16.mxu0 0
        %1967 = vmatpush2.bf16.xpose.msra.mxu0 0
        %1968 = vmatprep.subr.bf16.mxu0 0
        %1969 = vmatpush2.bf16.xpose.msra.mxu0 0
        %1970 = vmatprep.mubr.bf16.mxu0 0
        %1971 = vmatmul.mubr.bf16.gmra.mxu0 %v1930
        %v1972 = vpop.f32.mrf.mxu0
        %v1973 = vadd.f32 0.0, %v1972
        %v1974 = vpop.f32.mrf.mxu0
        %v1975 = vpop.f32.mrf.mxu0
        %v1976 = vadd.f32 0.0, %v1975
        %v1977 = vpop.f32.mrf.mxu0
        %1978 = vmatprep.mubr.bf16.mxu0 0
        %1979 = vmatmul.mubr.bf16.gmra.mxu0 %v1931
        %v1980 = vpop.f32.mrf.mxu0
        %v1981 = vadd.f32 0.0, %v1980
        %v1982 = vpop.f32.mrf.mxu0
        %v1983 = vpop.f32.mrf.mxu0
        %v1984 = vadd.f32 0.0, %v1983
        %v1985 = vpop.f32.mrf.mxu0
        %1986 = vmatprep.mubr.bf16.mxu0 0
        %1987 = vmatmul.mubr.bf16.gmra.mxu0 %v1932
        %v1988 = vpop.f32.mrf.mxu0
        %v1989 = vadd.f32 0.0, %v1988
        %v1990 = vpop.f32.mrf.mxu0
        %v1991 = vpop.f32.mrf.mxu0
        %v1992 = vadd.f32 0.0, %v1991
        %v1993 = vpop.f32.mrf.mxu0
        %1994 = vmatprep.mubr.bf16.mxu0 0
        %1995 = vmatmul.mubr.bf16.gmra.mxu0 %v1933
        %v1996 = vpop.f32.mrf.mxu0
        %v1997 = vadd.f32 0.0, %v1996
        %v1998 = vpop.f32.mrf.mxu0
        %v1999 = vpop.f32.mrf.mxu0
        %v2000 = vadd.f32 0.0, %v1999
        %v2001 = vpop.f32.mrf.mxu0
        %2002 = vmatprep.mubr.bf16.mxu0 0
        %2003 = vmatmul.mubr.bf16.gmra.mxu0 %v1934
        %v2004 = vpop.f32.mrf.mxu0
        %v2005 = vadd.f32 0.0, %v2004
        %v2006 = vpop.f32.mrf.mxu0
        %v2007 = vpop.f32.mrf.mxu0
        %v2008 = vadd.f32 0.0, %v2007
        %v2009 = vpop.f32.mrf.mxu0
        %2010 = vmatprep.mubr.bf16.mxu0 0
        %2011 = vmatmul.mubr.bf16.gmra.mxu0 %v1935
        %v2012 = vpop.f32.mrf.mxu0
        %v2013 = vadd.f32 0.0, %v2012
        %v2014 = vpop.f32.mrf.mxu0
        %v2015 = vpop.f32.mrf.mxu0
        %v2016 = vadd.f32 0.0, %v2015
        %v2017 = vpop.f32.mrf.mxu0
        %2018 = vmatprep.mubr.bf16.mxu0 0
        %2019 = vmatmul.mubr.bf16.gmra.mxu0 %v1936
        %v2020 = vpop.f32.mrf.mxu0
        %v2021 = vadd.f32 0.0, %v2020
        %v2022 = vpop.f32.mrf.mxu0
        %v2023 = vpop.f32.mrf.mxu0
        %v2024 = vadd.f32 0.0, %v2023
        %v2025 = vpop.f32.mrf.mxu0
        %2026 = vmatprep.mubr.bf16.mxu0 0
        %2027 = vmatmul.mubr.bf16.gmra.mxu0 %v1937
        %v2028 = vpop.f32.mrf.mxu0
        %v2029 = vadd.f32 0.0, %v2028
        %v2030 = vpop.f32.mrf.mxu0
        %v2031 = vpop.f32.mrf.mxu0
        %v2032 = vadd.f32 0.0, %v2031
        %v2033 = vpop.f32.mrf.mxu0
        %2034 = vdwg.mxu0
        %v2035 = vadd.f32 %v1866, %v1973
        %v2036 = vadd.f32 %v1867, %v1976
        %v2037 = vadd.f32 %v1868, %v1981
        %v2038 = vadd.f32 %v1869, %v1984
        %v2039 = vadd.f32 %v1870, %v1989
        %v2040 = vadd.f32 %v1871, %v1992
        %v2041 = vadd.f32 %v1872, %v1997
        %v2042 = vadd.f32 %v1873, %v2000
        %v2043 = vadd.f32 %v1874, %v2005
        %v2044 = vadd.f32 %v1875, %v2008
        %v2045 = vadd.f32 %v1876, %v2013
        %v2046 = vadd.f32 %v1877, %v2016
        %v2047 = vadd.f32 %v1878, %v2021
        %v2048 = vadd.f32 %v1879, %v2024
        %v2049 = vadd.f32 %v1880, %v2029
        %v2050 = vadd.f32 %v1881, %v2032
        %v2051 = vrcp.pop %v1914
        %v2052 = vrcp.pop %v1915
        %v2053 = vrcp.pop %v1916
        %v2054 = vrcp.pop %v1917
        %v2055 = vrcp.pop %v1918
        %v2056 = vrcp.pop %v1919
        %v2057 = vrcp.pop %v1920
        %v2058 = vrcp.pop %v1921
        %v2059 = vrcp.pop %v1922
        %v2060 = vrcp.pop %v1923
        %v2061 = vrcp.pop %v1924
        %v2062 = vrcp.pop %v1925
        %v2063 = vrcp.pop %v1926
        %v2064 = vrcp.pop %v1927
        %v2065 = vrcp.pop %v1928
        %v2066 = vrcp.pop %v1929
        %v2067 = vmul.f32 %v2035, %v2051
        %v2068 = vmul.f32 %v2036, %v2052
        %v2069 = vmul.f32 %v2037, %v2053
        %v2070 = vmul.f32 %v2038, %v2054
        %v2071 = vmul.f32 %v2039, %v2055
        %v2072 = vmul.f32 %v2040, %v2056
        %v2073 = vmul.f32 %v2041, %v2057
        %v2074 = vmul.f32 %v2042, %v2058
        %v2075 = vmul.f32 %v2043, %v2059
        %v2076 = vmul.f32 %v2044, %v2060
        %v2077 = vmul.f32 %v2045, %v2061
        %v2078 = vmul.f32 %v2046, %v2062
        %v2079 = vmul.f32 %v2047, %v2063
        %v2080 = vmul.f32 %v2048, %v2064
        %v2081 = vmul.f32 %v2049, %v2065
        %v2082 = vmul.f32 %v2050, %v2066
        %v2083 = vpack.c.bf16 %v2068, %v2067
        %v2084 = vpack.c.bf16 %v2070, %v2069
        %v2085 = vpack.c.bf16 %v2072, %v2071
        %v2086 = vpack.c.bf16 %v2074, %v2073
        %v2087 = vpack.c.bf16 %v2076, %v2075
        %v2088 = vpack.c.bf16 %v2078, %v2077
        %v2089 = vpack.c.bf16 %v2080, %v2079
        %v2090 = vpack.c.bf16 %v2082, %v2081
        %v2091 = vld [vmem:[%s2] sm:$0xf]
        %v2092 = vld [vmem:[%s2 + $0x4] sm:$0xf]
        %v2093 = vld [vmem:[%s2 + $0x8] sm:$0xf]
        %v2094 = vld [vmem:[%s2 + $0xc] sm:$0xf]
        %2095 = vxpose.xlu0.c.b16.start [1/8] %v392, 128
        %2096 = vxpose.xlu0.c.b16.cont [2/8] 0, 128
        %2097 = vxpose.xlu0.c.b16.cont [3/8] 0, 128
        %2098 = vxpose.xlu0.c.b16.cont [4/8] 0, 128
        %2099 = vxpose.xlu0.c.b16.cont [5/8] 0, 128
        %2100 = vxpose.xlu0.c.b16.cont [6/8] 0, 128
        %2101 = vxpose.xlu0.c.b16.cont [7/8] 0, 128
        %2102 = vxpose.xlu0.c.b16.end [8/8] 0, 128
        %v2103 = vpop.trf.xlu0
        %v2104 = vpop.trf.xlu0
        %v2105 = vpop.trf.xlu0
        %v2106 = vpop.trf.xlu0
        %v2107 = vpop.trf.xlu0
        %v2108 = vpop.trf.xlu0
        %v2109 = vpop.trf.xlu0
        %v2110 = vpop.trf.xlu0
        %v2112 = vsel %vm417, %v2103, 0
        %v2115 = vsel %vm417, %v2104, 0
        %v2118 = vsel %vm417, %v2105, 0
        %v2121 = vsel %vm417, %v2106, 0
        %v2124 = vsel %vm417, %v2107, 0
        %v2127 = vsel %vm417, %v2108, 0
        %v2130 = vsel %vm417, %v2109, 0
        %v2133 = vsel %vm417, %v2110, 0
        %2135 = vmatprep.subr.bf16.mxu0 0
        %2136 = vmatpush1.bf16.msra.mxu0 0
        %2137 = vmatprep.subr.bf16.mxu0 0
        %2138 = vmatpush1.bf16.msra.mxu0 0
        %2139 = vmatprep.subr.bf16.mxu0 0
        %2140 = vmatpush1.bf16.msra.mxu0 0
        %2141 = vmatprep.subr.bf16.mxu0 0
        %2142 = vmatpush1.bf16.msra.mxu0 0
        %2143 = vmatprep.subr.bf16.mxu0 0
        %2144 = vmatpush1.bf16.msra.mxu0 0
        %2145 = vmatprep.subr.bf16.mxu0 0
        %2146 = vmatpush1.bf16.msra.mxu0 0
        %2147 = vmatprep.subr.bf16.mxu0 0
        %2148 = vmatpush1.bf16.msra.mxu0 0
        %2149 = vmatprep.subr.bf16.mxu0 0
        %2150 = vmatpush1.bf16.msra.mxu0 %v396
        %2151 = vmatprep.subr.bf16.mxu0 0
        %2152 = vmatpush2.bf16.msra.mxu0 0
        %2153 = vmatprep.subr.bf16.mxu0 0
        %2154 = vmatpush2.bf16.msra.mxu0 0
        %2155 = vmatprep.subr.bf16.mxu0 0
        %2156 = vmatpush2.bf16.msra.mxu0 0
        %2157 = vmatprep.subr.bf16.mxu0 0
        %2158 = vmatpush2.bf16.msra.mxu0 0
        %2159 = vmatprep.subr.bf16.mxu0 0
        %2160 = vmatpush2.bf16.msra.mxu0 0
        %2161 = vmatprep.subr.bf16.mxu0 0
        %2162 = vmatpush2.bf16.msra.mxu0 0
        %2163 = vmatprep.subr.bf16.mxu0 0
        %2164 = vmatpush2.bf16.msra.mxu0 0
        %2165 = vmatprep.subr.bf16.mxu0 0
        %2166 = vmatpush2.bf16.msra.mxu0 0
        %2167 = vmatprep.mubr.bf16.mxu0 0
        %2168 = vmatmul.mubr.bf16.gmra.mxu0 %v2112
        %v2169 = vpop.f32.mrf.mxu0
        %v2170 = vadd.f32 0.0, %v2169
        %v2171 = vpop.f32.mrf.mxu0
        %v2172 = vpop.f32.mrf.mxu0
        %v2173 = vadd.f32 0.0, %v2172
        %v2174 = vpop.f32.mrf.mxu0
        %2175 = vmatprep.mubr.bf16.mxu0 0
        %2176 = vmatmul.mubr.bf16.gmra.mxu0 %v2115
        %v2177 = vpop.f32.mrf.mxu0
        %v2178 = vadd.f32 0.0, %v2177
        %v2179 = vpop.f32.mrf.mxu0
        %v2180 = vpop.f32.mrf.mxu0
        %v2181 = vadd.f32 0.0, %v2180
        %v2182 = vpop.f32.mrf.mxu0
        %2183 = vmatprep.mubr.bf16.mxu0 0
        %2184 = vmatmul.mubr.bf16.gmra.mxu0 %v2118
        %v2185 = vpop.f32.mrf.mxu0
        %v2186 = vadd.f32 0.0, %v2185
        %v2187 = vpop.f32.mrf.mxu0
        %v2188 = vpop.f32.mrf.mxu0
        %v2189 = vadd.f32 0.0, %v2188
        %v2190 = vpop.f32.mrf.mxu0
        %2191 = vmatprep.mubr.bf16.mxu0 0
        %2192 = vmatmul.mubr.bf16.gmra.mxu0 %v2121
        %v2193 = vpop.f32.mrf.mxu0
        %v2194 = vadd.f32 0.0, %v2193
        %v2195 = vpop.f32.mrf.mxu0
        %v2196 = vpop.f32.mrf.mxu0
        %v2197 = vadd.f32 0.0, %v2196
        %v2198 = vpop.f32.mrf.mxu0
        %2199 = vmatprep.mubr.bf16.mxu0 0
        %2200 = vmatmul.mubr.bf16.gmra.mxu0 %v2124
        %v2201 = vpop.f32.mrf.mxu0
        %v2202 = vadd.f32 0.0, %v2201
        %v2203 = vpop.f32.mrf.mxu0
        %v2204 = vpop.f32.mrf.mxu0
        %v2205 = vadd.f32 0.0, %v2204
        %v2206 = vpop.f32.mrf.mxu0
        %2207 = vmatprep.mubr.bf16.mxu0 0
        %2208 = vmatmul.mubr.bf16.gmra.mxu0 %v2127
        %v2209 = vpop.f32.mrf.mxu0
        %v2210 = vadd.f32 0.0, %v2209
        %v2211 = vpop.f32.mrf.mxu0
        %v2212 = vpop.f32.mrf.mxu0
        %v2213 = vadd.f32 0.0, %v2212
        %v2214 = vpop.f32.mrf.mxu0
        %2215 = vmatprep.mubr.bf16.mxu0 0
        %2216 = vmatmul.mubr.bf16.gmra.mxu0 %v2130
        %v2217 = vpop.f32.mrf.mxu0
        %v2218 = vadd.f32 0.0, %v2217
        %v2219 = vpop.f32.mrf.mxu0
        %v2220 = vpop.f32.mrf.mxu0
        %v2221 = vadd.f32 0.0, %v2220
        %v2222 = vpop.f32.mrf.mxu0
        %2223 = vmatprep.mubr.bf16.mxu0 0
        %2224 = vmatmul.mubr.bf16.gmra.mxu0 %v2133
        %v2225 = vpop.f32.mrf.mxu0
        %v2226 = vadd.f32 0.0, %v2225
        %v2227 = vpop.f32.mrf.mxu0
        %v2228 = vpop.f32.mrf.mxu0
        %v2229 = vadd.f32 0.0, %v2228
        %v2230 = vpop.f32.mrf.mxu0
        %2231 = vdwg.mxu0
        %2232 = vmax.xlane.f32.xlu0 %v2170
        %v2233 = vpop.xlane.xlu0 %2232
        %2234 = vmax.xlane.f32.xlu0 %v2173
        %v2235 = vpop.xlane.xlu0 %2234
        %2236 = vmax.xlane.f32.xlu0 %v2178
        %v2237 = vpop.xlane.xlu0 %2236
        %2238 = vmax.xlane.f32.xlu0 %v2181
        %v2239 = vpop.xlane.xlu0 %2238
        %2240 = vmax.xlane.f32.xlu0 %v2186
        %v2241 = vpop.xlane.xlu0 %2240
        %2242 = vmax.xlane.f32.xlu0 %v2189
        %v2243 = vpop.xlane.xlu0 %2242
        %2244 = vmax.xlane.f32.xlu0 %v2194
        %v2245 = vpop.xlane.xlu0 %2244
        %2246 = vmax.xlane.f32.xlu0 %v2197
        %v2247 = vpop.xlane.xlu0 %2246
        %2248 = vmax.xlane.f32.xlu0 %v2202
        %v2249 = vpop.xlane.xlu0 %2248
        %2250 = vmax.xlane.f32.xlu0 %v2205
        %v2251 = vpop.xlane.xlu0 %2250
        %2252 = vmax.xlane.f32.xlu0 %v2210
        %v2253 = vpop.xlane.xlu0 %2252
        %2254 = vmax.xlane.f32.xlu0 %v2213
        %v2255 = vpop.xlane.xlu0 %2254
        %2256 = vmax.xlane.f32.xlu0 %v2218
        %v2257 = vpop.xlane.xlu0 %2256
        %2258 = vmax.xlane.f32.xlu0 %v2221
        %v2259 = vpop.xlane.xlu0 %2258
        %2260 = vmax.xlane.f32.xlu0 %v2226
        %v2261 = vpop.xlane.xlu0 %2260
        %2262 = vmax.xlane.f32.xlu0 %v2229
        %v2263 = vpop.xlane.xlu0 %2262
        %v2264 = vsub.f32 -inf, %v2233
        %v2265 = vsub.f32 -inf, %v2235
        %v2266 = vsub.f32 -inf, %v2237
        %v2267 = vsub.f32 -inf, %v2239
        %v2268 = vsub.f32 -inf, %v2241
        %v2269 = vsub.f32 -inf, %v2243
        %v2270 = vsub.f32 -inf, %v2245
        %v2271 = vsub.f32 -inf, %v2247
        %v2272 = vsub.f32 -inf, %v2249
        %v2273 = vsub.f32 -inf, %v2251
        %v2274 = vsub.f32 -inf, %v2253
        %v2275 = vsub.f32 -inf, %v2255
        %v2276 = vsub.f32 -inf, %v2257
        %v2277 = vsub.f32 -inf, %v2259
        %v2278 = vsub.f32 -inf, %v2261
        %v2279 = vsub.f32 -inf, %v2263
        %v2280 = vmul.f32 %v2264, 1.442695
        %v2281 = vpow.pop %v2280
        %v2282 = vmul.f32 %v2265, 1.442695
        %v2283 = vpow.pop %v2282
        %v2284 = vmul.f32 %v2266, 1.442695
        %v2285 = vpow.pop %v2284
        %v2286 = vmul.f32 %v2267, 1.442695
        %v2287 = vpow.pop %v2286
        %v2288 = vmul.f32 %v2268, 1.442695
        %v2289 = vpow.pop %v2288
        %v2290 = vmul.f32 %v2269, 1.442695
        %v2291 = vpow.pop %v2290
        %v2292 = vmul.f32 %v2270, 1.442695
        %v2293 = vpow.pop %v2292
        %v2294 = vmul.f32 %v2271, 1.442695
        %v2295 = vpow.pop %v2294
        %v2296 = vmul.f32 %v2272, 1.442695
        %v2297 = vpow.pop %v2296
        %v2298 = vmul.f32 %v2273, 1.442695
        %v2299 = vpow.pop %v2298
        %v2300 = vmul.f32 %v2274, 1.442695
        %v2301 = vpow.pop %v2300
        %v2302 = vmul.f32 %v2275, 1.442695
        %v2303 = vpow.pop %v2302
        %v2304 = vmul.f32 %v2276, 1.442695
        %v2305 = vpow.pop %v2304
        %v2306 = vmul.f32 %v2277, 1.442695
        %v2307 = vpow.pop %v2306
        %v2308 = vmul.f32 %v2278, 1.442695
        %v2309 = vpow.pop %v2308
        %v2310 = vmul.f32 %v2279, 1.442695
        %v2311 = vpow.pop %v2310
        %v2312 = vsub.f32 %v2170, %v2233
        %v2313 = vsub.f32 %v2173, %v2235
        %v2314 = vsub.f32 %v2178, %v2237
        %v2315 = vsub.f32 %v2181, %v2239
        %v2316 = vsub.f32 %v2186, %v2241
        %v2317 = vsub.f32 %v2189, %v2243
        %v2318 = vsub.f32 %v2194, %v2245
        %v2319 = vsub.f32 %v2197, %v2247
        %v2320 = vsub.f32 %v2202, %v2249
        %v2321 = vsub.f32 %v2205, %v2251
        %v2322 = vsub.f32 %v2210, %v2253
        %v2323 = vsub.f32 %v2213, %v2255
        %v2324 = vsub.f32 %v2218, %v2257
        %v2325 = vsub.f32 %v2221, %v2259
        %v2326 = vsub.f32 %v2226, %v2261
        %v2327 = vsub.f32 %v2229, %v2263
        %v2328 = vmul.f32 %v2312, 1.442695
        %v2329 = vpow.pop %v2328
        %v2330 = vmul.f32 %v2313, 1.442695
        %v2331 = vpow.pop %v2330
        %v2332 = vmul.f32 %v2314, 1.442695
        %v2333 = vpow.pop %v2332
        %v2334 = vmul.f32 %v2315, 1.442695
        %v2335 = vpow.pop %v2334
        %v2336 = vmul.f32 %v2316, 1.442695
        %v2337 = vpow.pop %v2336
        %v2338 = vmul.f32 %v2317, 1.442695
        %v2339 = vpow.pop %v2338
        %v2340 = vmul.f32 %v2318, 1.442695
        %v2341 = vpow.pop %v2340
        %v2342 = vmul.f32 %v2319, 1.442695
        %v2343 = vpow.pop %v2342
        %v2344 = vmul.f32 %v2320, 1.442695
        %v2345 = vpow.pop %v2344
        %v2346 = vmul.f32 %v2321, 1.442695
        %v2347 = vpow.pop %v2346
        %v2348 = vmul.f32 %v2322, 1.442695
        %v2349 = vpow.pop %v2348
        %v2350 = vmul.f32 %v2323, 1.442695
        %v2351 = vpow.pop %v2350
        %v2352 = vmul.f32 %v2324, 1.442695
        %v2353 = vpow.pop %v2352
        %v2354 = vmul.f32 %v2325, 1.442695
        %v2355 = vpow.pop %v2354
        %v2356 = vmul.f32 %v2326, 1.442695
        %v2357 = vpow.pop %v2356
        %v2358 = vmul.f32 %v2327, 1.442695
        %v2359 = vpow.pop %v2358
        %v2360 = vmul.f32 %v2281, 0.0
        %v2361 = vmul.f32 %v2283, 0.0
        %v2362 = vmul.f32 %v2285, 0.0
        %v2363 = vmul.f32 %v2287, 0.0
        %v2364 = vmul.f32 %v2289, 0.0
        %v2365 = vmul.f32 %v2291, 0.0
        %v2366 = vmul.f32 %v2293, 0.0
        %v2367 = vmul.f32 %v2295, 0.0
        %v2368 = vmul.f32 %v2297, 0.0
        %v2369 = vmul.f32 %v2299, 0.0
        %v2370 = vmul.f32 %v2301, 0.0
        %v2371 = vmul.f32 %v2303, 0.0
        %v2372 = vmul.f32 %v2305, 0.0
        %v2373 = vmul.f32 %v2307, 0.0
        %v2374 = vmul.f32 %v2309, 0.0
        %v2375 = vmul.f32 %v2311, 0.0
        %2376 = vadd.xlane.f32.xlu0 %v2329
        %v2377 = vpop.xlane.xlu0 %2376
        %2378 = vadd.xlane.f32.xlu0 %v2331
        %v2379 = vpop.xlane.xlu0 %2378
        %2380 = vadd.xlane.f32.xlu0 %v2333
        %v2381 = vpop.xlane.xlu0 %2380
        %2382 = vadd.xlane.f32.xlu0 %v2335
        %v2383 = vpop.xlane.xlu0 %2382
        %2384 = vadd.xlane.f32.xlu0 %v2337
        %v2385 = vpop.xlane.xlu0 %2384
        %2386 = vadd.xlane.f32.xlu0 %v2339
        %v2387 = vpop.xlane.xlu0 %2386
        %2388 = vadd.xlane.f32.xlu0 %v2341
        %v2389 = vpop.xlane.xlu0 %2388
        %2390 = vadd.xlane.f32.xlu0 %v2343
        %v2391 = vpop.xlane.xlu0 %2390
        %2392 = vadd.xlane.f32.xlu0 %v2345
        %v2393 = vpop.xlane.xlu0 %2392
        %2394 = vadd.xlane.f32.xlu0 %v2347
        %v2395 = vpop.xlane.xlu0 %2394
        %2396 = vadd.xlane.f32.xlu0 %v2349
        %v2397 = vpop.xlane.xlu0 %2396
        %2398 = vadd.xlane.f32.xlu0 %v2351
        %v2399 = vpop.xlane.xlu0 %2398
        %2400 = vadd.xlane.f32.xlu0 %v2353
        %v2401 = vpop.xlane.xlu0 %2400
        %2402 = vadd.xlane.f32.xlu0 %v2355
        %v2403 = vpop.xlane.xlu0 %2402
        %2404 = vadd.xlane.f32.xlu0 %v2357
        %v2405 = vpop.xlane.xlu0 %2404
        %2406 = vadd.xlane.f32.xlu0 %v2359
        %v2407 = vpop.xlane.xlu0 %2406
        %v2408 = vadd.f32 %v2360, %v2377
        %v2409 = vadd.f32 %v2361, %v2379
        %v2410 = vadd.f32 %v2362, %v2381
        %v2411 = vadd.f32 %v2363, %v2383
        %v2412 = vadd.f32 %v2364, %v2385
        %v2413 = vadd.f32 %v2365, %v2387
        %v2414 = vadd.f32 %v2366, %v2389
        %v2415 = vadd.f32 %v2367, %v2391
        %v2416 = vadd.f32 %v2368, %v2393
        %v2417 = vadd.f32 %v2369, %v2395
        %v2418 = vadd.f32 %v2370, %v2397
        %v2419 = vadd.f32 %v2371, %v2399
        %v2420 = vadd.f32 %v2372, %v2401
        %v2421 = vadd.f32 %v2373, %v2403
        %v2422 = vadd.f32 %v2374, %v2405
        %v2423 = vadd.f32 %v2375, %v2407
        %v2424 = vpack.c.bf16 %v2331, %v2329
        %v2425 = vpack.c.bf16 %v2335, %v2333
        %v2426 = vpack.c.bf16 %v2339, %v2337
        %v2427 = vpack.c.bf16 %v2343, %v2341
        %v2428 = vpack.c.bf16 %v2347, %v2345
        %v2429 = vpack.c.bf16 %v2351, %v2349
        %v2430 = vpack.c.bf16 %v2355, %v2353
        %v2431 = vpack.c.bf16 %v2359, %v2357
        %2432 = vmatprep.subr.bf16.mxu0 0
        %2433 = vmatpush1.bf16.xpose.msra.mxu0 0
        %2434 = vmatprep.subr.bf16.mxu0 0
        %2435 = vmatpush1.bf16.xpose.msra.mxu0 0
        %2436 = vmatprep.subr.bf16.mxu0 0
        %2437 = vmatpush1.bf16.xpose.msra.mxu0 0
        %2438 = vmatprep.subr.bf16.mxu0 0
        %2439 = vmatpush1.bf16.xpose.msra.mxu0 0
        %2440 = vmatprep.subr.bf16.mxu0 0
        %2441 = vmatpush1.bf16.xpose.msra.mxu0 0
        %2442 = vmatprep.subr.bf16.mxu0 0
        %2443 = vmatpush1.bf16.xpose.msra.mxu0 0
        %2444 = vmatprep.subr.bf16.mxu0 0
        %2445 = vmatpush1.bf16.xpose.msra.mxu0 0
        %2446 = vmatprep.subr.bf16.mxu0 0
        %2447 = vmatpush1.bf16.xpose.msra.mxu0 %v400
        %2448 = vmatprep.subr.bf16.mxu0 0
        %2449 = vmatpush2.bf16.xpose.msra.mxu0 0
        %2450 = vmatprep.subr.bf16.mxu0 0
        %2451 = vmatpush2.bf16.xpose.msra.mxu0 0
        %2452 = vmatprep.subr.bf16.mxu0 0
        %2453 = vmatpush2.bf16.xpose.msra.mxu0 0
        %2454 = vmatprep.subr.bf16.mxu0 0
        %2455 = vmatpush2.bf16.xpose.msra.mxu0 0
        %2456 = vmatprep.subr.bf16.mxu0 0
        %2457 = vmatpush2.bf16.xpose.msra.mxu0 0
        %2458 = vmatprep.subr.bf16.mxu0 0
        %2459 = vmatpush2.bf16.xpose.msra.mxu0 0
        %2460 = vmatprep.subr.bf16.mxu0 0
        %2461 = vmatpush2.bf16.xpose.msra.mxu0 0
        %2462 = vmatprep.subr.bf16.mxu0 0
        %2463 = vmatpush2.bf16.xpose.msra.mxu0 0
        %2464 = vmatprep.mubr.bf16.mxu0 0
        %2465 = vmatmul.mubr.bf16.gmra.mxu0 %v2424
        %v2466 = vpop.f32.mrf.mxu0
        %v2467 = vadd.f32 0.0, %v2466
        %v2468 = vpop.f32.mrf.mxu0
        %v2469 = vpop.f32.mrf.mxu0
        %v2470 = vadd.f32 0.0, %v2469
        %v2471 = vpop.f32.mrf.mxu0
        %2472 = vmatprep.mubr.bf16.mxu0 0
        %2473 = vmatmul.mubr.bf16.gmra.mxu0 %v2425
        %v2474 = vpop.f32.mrf.mxu0
        %v2475 = vadd.f32 0.0, %v2474
        %v2476 = vpop.f32.mrf.mxu0
        %v2477 = vpop.f32.mrf.mxu0
        %v2478 = vadd.f32 0.0, %v2477
        %v2479 = vpop.f32.mrf.mxu0
        %2480 = vmatprep.mubr.bf16.mxu0 0
        %2481 = vmatmul.mubr.bf16.gmra.mxu0 %v2426
        %v2482 = vpop.f32.mrf.mxu0
        %v2483 = vadd.f32 0.0, %v2482
        %v2484 = vpop.f32.mrf.mxu0
        %v2485 = vpop.f32.mrf.mxu0
        %v2486 = vadd.f32 0.0, %v2485
        %v2487 = vpop.f32.mrf.mxu0
        %2488 = vmatprep.mubr.bf16.mxu0 0
        %2489 = vmatmul.mubr.bf16.gmra.mxu0 %v2427
        %v2490 = vpop.f32.mrf.mxu0
        %v2491 = vadd.f32 0.0, %v2490
        %v2492 = vpop.f32.mrf.mxu0
        %v2493 = vpop.f32.mrf.mxu0
        %v2494 = vadd.f32 0.0, %v2493
        %v2495 = vpop.f32.mrf.mxu0
        %2496 = vmatprep.mubr.bf16.mxu0 0
        %2497 = vmatmul.mubr.bf16.gmra.mxu0 %v2428
        %v2498 = vpop.f32.mrf.mxu0
        %v2499 = vadd.f32 0.0, %v2498
        %v2500 = vpop.f32.mrf.mxu0
        %v2501 = vpop.f32.mrf.mxu0
        %v2502 = vadd.f32 0.0, %v2501
        %v2503 = vpop.f32.mrf.mxu0
        %2504 = vmatprep.mubr.bf16.mxu0 0
        %2505 = vmatmul.mubr.bf16.gmra.mxu0 %v2429
        %v2506 = vpop.f32.mrf.mxu0
        %v2507 = vadd.f32 0.0, %v2506
        %v2508 = vpop.f32.mrf.mxu0
        %v2509 = vpop.f32.mrf.mxu0
        %v2510 = vadd.f32 0.0, %v2509
        %v2511 = vpop.f32.mrf.mxu0
        %2512 = vmatprep.mubr.bf16.mxu0 0
        %2513 = vmatmul.mubr.bf16.gmra.mxu0 %v2430
        %v2514 = vpop.f32.mrf.mxu0
        %v2515 = vadd.f32 0.0, %v2514
        %v2516 = vpop.f32.mrf.mxu0
        %v2517 = vpop.f32.mrf.mxu0
        %v2518 = vadd.f32 0.0, %v2517
        %v2519 = vpop.f32.mrf.mxu0
        %2520 = vmatprep.mubr.bf16.mxu0 0
        %2521 = vmatmul.mubr.bf16.gmra.mxu0 %v2431
        %v2522 = vpop.f32.mrf.mxu0
        %v2523 = vadd.f32 0.0, %v2522
        %v2524 = vpop.f32.mrf.mxu0
        %v2525 = vpop.f32.mrf.mxu0
        %v2526 = vadd.f32 0.0, %v2525
        %v2527 = vpop.f32.mrf.mxu0
        %2528 = vdwg.mxu0
        %v2529 = vadd.f32 %v2360, %v2467
        %v2530 = vadd.f32 %v2361, %v2470
        %v2531 = vadd.f32 %v2362, %v2475
        %v2532 = vadd.f32 %v2363, %v2478
        %v2533 = vadd.f32 %v2364, %v2483
        %v2534 = vadd.f32 %v2365, %v2486
        %v2535 = vadd.f32 %v2366, %v2491
        %v2536 = vadd.f32 %v2367, %v2494
        %v2537 = vadd.f32 %v2368, %v2499
        %v2538 = vadd.f32 %v2369, %v2502
        %v2539 = vadd.f32 %v2370, %v2507
        %v2540 = vadd.f32 %v2371, %v2510
        %v2541 = vadd.f32 %v2372, %v2515
        %v2542 = vadd.f32 %v2373, %v2518
        %v2543 = vadd.f32 %v2374, %v2523
        %v2544 = vadd.f32 %v2375, %v2526
        %v2545 = vrcp.pop %v2408
        %v2546 = vrcp.pop %v2409
        %v2547 = vrcp.pop %v2410
        %v2548 = vrcp.pop %v2411
        %v2549 = vrcp.pop %v2412
        %v2550 = vrcp.pop %v2413
        %v2551 = vrcp.pop %v2414
        %v2552 = vrcp.pop %v2415
        %v2553 = vrcp.pop %v2416
        %v2554 = vrcp.pop %v2417
        %v2555 = vrcp.pop %v2418
        %v2556 = vrcp.pop %v2419
        %v2557 = vrcp.pop %v2420
        %v2558 = vrcp.pop %v2421
        %v2559 = vrcp.pop %v2422
        %v2560 = vrcp.pop %v2423
        %v2561 = vmul.f32 %v2529, %v2545
        %v2562 = vmul.f32 %v2530, %v2546
        %v2563 = vmul.f32 %v2531, %v2547
        %v2564 = vmul.f32 %v2532, %v2548
        %v2565 = vmul.f32 %v2533, %v2549
        %v2566 = vmul.f32 %v2534, %v2550
        %v2567 = vmul.f32 %v2535, %v2551
        %v2568 = vmul.f32 %v2536, %v2552
        %v2569 = vmul.f32 %v2537, %v2553
        %v2570 = vmul.f32 %v2538, %v2554
        %v2571 = vmul.f32 %v2539, %v2555
        %v2572 = vmul.f32 %v2540, %v2556
        %v2573 = vmul.f32 %v2541, %v2557
        %v2574 = vmul.f32 %v2542, %v2558
        %v2575 = vmul.f32 %v2543, %v2559
        %v2576 = vmul.f32 %v2544, %v2560
        %v2577 = vpack.c.bf16 %v2562, %v2561
        %v2578 = vpack.c.bf16 %v2564, %v2563
        %v2579 = vpack.c.bf16 %v2566, %v2565
        %v2580 = vpack.c.bf16 %v2568, %v2567
        %v2581 = vpack.c.bf16 %v2570, %v2569
        %v2582 = vpack.c.bf16 %v2572, %v2571
        %v2583 = vpack.c.bf16 %v2574, %v2573
        %v2584 = vpack.c.bf16 %v2576, %v2575
        %v2585 = vld [vmem:[%s1386] sm:$0xf]
        %v2586 = vld [vmem:[%s1386 + $0x4] sm:$0xf]
        %v2587 = vld [vmem:[%s1386 + $0x8] sm:$0xf]
        %v2588 = vld [vmem:[%s1386 + $0xc] sm:$0xf]
        %v2593 = vunpack.c.l.b16 %v2585
        %v2594 = vunpack.c.l.b16 %v2586
        %v2595 = vunpack.c.l.b16 %v2587
        %v2596 = vunpack.c.l.b16 %v2588
        %v2597 = vpack.c.b16 %v2594, %v2593
        %v2598 = vpack.c.b16 %v2596, %v2595
        %v2600 = vsel %vm417, %v2597, 0
        %v2603 = vsel %vm417, %v2598, 0
        %v2606 = vsel %vm417, %v2577, 0
        %v2609 = vsel %vm417, %v2578, 0
        %v2612 = vsel %vm417, %v2579, 0
        %v2615 = vsel %vm417, %v2580, 0
        %v2618 = vsel %vm417, %v2581, 0
        %v2621 = vsel %vm417, %v2582, 0
        %v2624 = vsel %vm417, %v2583, 0
        %v2627 = vsel %vm417, %v2584, 0
        %2629 = vmatprep.subr.bf16.mxu0 0
        %2630 = vmatpush1.bf16.xpose.msra.mxu0 %v2627
        %2631 = vmatprep.subr.bf16.mxu0 0
        %2632 = vmatpush1.bf16.xpose.msra.mxu0 %v2624
        %2633 = vmatprep.subr.bf16.mxu0 0
        %2634 = vmatpush1.bf16.xpose.msra.mxu0 %v2621
        %2635 = vmatprep.subr.bf16.mxu0 0
        %2636 = vmatpush1.bf16.xpose.msra.mxu0 %v2618
        %2637 = vmatprep.subr.bf16.mxu0 0
        %2638 = vmatpush1.bf16.xpose.msra.mxu0 %v2615
        %2639 = vmatprep.subr.bf16.mxu0 0
        %2640 = vmatpush1.bf16.xpose.msra.mxu0 %v2612
        %2641 = vmatprep.subr.bf16.mxu0 0
        %2642 = vmatpush1.bf16.xpose.msra.mxu0 %v2609
        %2643 = vmatprep.subr.bf16.mxu0 0
        %2644 = vmatpush1.bf16.xpose.msra.mxu0 %v2606
        %2645 = vmatprep.subr.bf16.mxu0 0
        %2646 = vmatpush2.bf16.xpose.msra.mxu0 0
        %2647 = vmatprep.subr.bf16.mxu0 0
        %2648 = vmatpush2.bf16.xpose.msra.mxu0 0
        %2649 = vmatprep.subr.bf16.mxu0 0
        %2650 = vmatpush2.bf16.xpose.msra.mxu0 0
        %2651 = vmatprep.subr.bf16.mxu0 0
        %2652 = vmatpush2.bf16.xpose.msra.mxu0 0
        %2653 = vmatprep.subr.bf16.mxu0 0
        %2654 = vmatpush2.bf16.xpose.msra.mxu0 0
        %2655 = vmatprep.subr.bf16.mxu0 0
        %2656 = vmatpush2.bf16.xpose.msra.mxu0 0
        %2657 = vmatprep.subr.bf16.mxu0 0
        %2658 = vmatpush2.bf16.xpose.msra.mxu0 0
        %2659 = vmatprep.subr.bf16.mxu0 0
        %2660 = vmatpush2.bf16.xpose.msra.mxu0 0
        %2661 = vmatprep.mubr.bf16.mxu0 0
        %2662 = vmatmul.mubr.bf16.gmra.mxu0 %v2600
        %v2663 = vpop.f32.mrf.mxu0
        %v2664 = vadd.f32 0.0, %v2663
        %v2665 = vpop.f32.mrf.mxu0
        %v2666 = vpop.f32.mrf.mxu0
        %v2667 = vadd.f32 0.0, %v2666
        %v2668 = vpop.f32.mrf.mxu0
        %2669 = vmatprep.mubr.bf16.mxu0 0
        %2670 = vmatmul.mubr.bf16.gmra.mxu0 %v2603
        %v2671 = vpop.f32.mrf.mxu0
        %v2672 = vadd.f32 0.0, %v2671
        %v2673 = vpop.f32.mrf.mxu0
        %v2674 = vpop.f32.mrf.mxu0
        %v2675 = vadd.f32 0.0, %v2674
        %v2676 = vpop.f32.mrf.mxu0
        %2677 = vdwg.mxu0
        %v2682 = vunpack.c.l.b16 %v2091
        %v2683 = vunpack.c.l.b16 %v2092
        %v2684 = vunpack.c.l.b16 %v2093
        %v2685 = vunpack.c.l.b16 %v2094
        %v2686 = vpack.c.b16 %v2683, %v2682
        %v2687 = vpack.c.b16 %v2685, %v2684
        %v2689 = vsel %vm417, %v2686, 0
        %v2692 = vsel %vm417, %v2687, 0
        %v2695 = vsel %vm417, %v2083, 0
        %v2698 = vsel %vm417, %v2084, 0
        %v2701 = vsel %vm417, %v2085, 0
        %v2704 = vsel %vm417, %v2086, 0
        %v2707 = vsel %vm417, %v2087, 0
        %v2710 = vsel %vm417, %v2088, 0
        %v2713 = vsel %vm417, %v2089, 0
        %v2716 = vsel %vm417, %v2090, 0
        %2718 = vmatprep.subr.bf16.mxu0 0
        %2719 = vmatpush1.bf16.xpose.msra.mxu0 %v2716
        %2720 = vmatprep.subr.bf16.mxu0 0
        %2721 = vmatpush1.bf16.xpose.msra.mxu0 %v2713
        %2722 = vmatprep.subr.bf16.mxu0 0
        %2723 = vmatpush1.bf16.xpose.msra.mxu0 %v2710
        %2724 = vmatprep.subr.bf16.mxu0 0
        %2725 = vmatpush1.bf16.xpose.msra.mxu0 %v2707
        %2726 = vmatprep.subr.bf16.mxu0 0
        %2727 = vmatpush1.bf16.xpose.msra.mxu0 %v2704
        %2728 = vmatprep.subr.bf16.mxu0 0
        %2729 = vmatpush1.bf16.xpose.msra.mxu0 %v2701
        %2730 = vmatprep.subr.bf16.mxu0 0
        %2731 = vmatpush1.bf16.xpose.msra.mxu0 %v2698
        %2732 = vmatprep.subr.bf16.mxu0 0
        %2733 = vmatpush1.bf16.xpose.msra.mxu0 %v2695
        %2734 = vmatprep.subr.bf16.mxu0 0
        %2735 = vmatpush2.bf16.xpose.msra.mxu0 0
        %2736 = vmatprep.subr.bf16.mxu0 0
        %2737 = vmatpush2.bf16.xpose.msra.mxu0 0
        %2738 = vmatprep.subr.bf16.mxu0 0
        %2739 = vmatpush2.bf16.xpose.msra.mxu0 0
        %2740 = vmatprep.subr.bf16.mxu0 0
        %2741 = vmatpush2.bf16.xpose.msra.mxu0 0
        %2742 = vmatprep.subr.bf16.mxu0 0
        %2743 = vmatpush2.bf16.xpose.msra.mxu0 0
        %2744 = vmatprep.subr.bf16.mxu0 0
        %2745 = vmatpush2.bf16.xpose.msra.mxu0 0
        %2746 = vmatprep.subr.bf16.mxu0 0
        %2747 = vmatpush2.bf16.xpose.msra.mxu0 0
        %2748 = vmatprep.subr.bf16.mxu0 0
        %2749 = vmatpush2.bf16.xpose.msra.mxu0 0
        %2750 = vmatprep.mubr.bf16.mxu0 0
        %2751 = vmatmul.mubr.bf16.gmra.mxu0 %v2689
        %v2752 = vpop.f32.mrf.mxu0
        %v2753 = vadd.f32 %v2664, %v2752
        %v2754 = vpop.f32.mrf.mxu0
        %v2755 = vpop.f32.mrf.mxu0
        %v2756 = vadd.f32 %v2667, %v2755
        %v2757 = vpop.f32.mrf.mxu0
        %2758 = vmatprep.mubr.bf16.mxu0 0
        %2759 = vmatmul.mubr.bf16.gmra.mxu0 %v2692
        %v2760 = vpop.f32.mrf.mxu0
        %v2761 = vadd.f32 %v2672, %v2760
        %v2762 = vpop.f32.mrf.mxu0
        %v2763 = vpop.f32.mrf.mxu0
        %v2764 = vadd.f32 %v2675, %v2763
        %v2765 = vpop.f32.mrf.mxu0
        %2766 = vdwg.mxu0
        %v2767 = vld [vmem:[%s3] sm:$0xff]
        %v2768 = vld [vmem:[%s3 + $0x8] sm:$0xff]
        %v2769 = vld [vmem:[%s3 + $0x10] sm:$0xff]
        %v2770 = vld [vmem:[%s3 + $0x18] sm:$0xff]
        %2772 = vset.pattern.permute.xlu0 0
        %2773 = vperm.xlu0 %2772, %v2767
        %v2774 = vpop.permute.xlu0 %2773
        %2777 = vset.pattern.permute.xlu0 0
        %2778 = vperm.xlu0 %2777, %v2768
        %v2779 = vpop.permute.xlu0 %2778
        %2782 = vset.pattern.permute.xlu0 0
        %2783 = vperm.xlu0 %2782, %v2769
        %v2784 = vpop.permute.xlu0 %2783
        %2787 = vset.pattern.permute.xlu0 0
        %2788 = vperm.xlu0 %2787, %v2770
        %v2789 = vpop.permute.xlu0 %2788
        %v2791 = vadd.f32 %v2753, %v2774
        %v2792 = vadd.f32 %v2756, %v2779
        %v2793 = vadd.f32 %v2761, %v2784
        %v2794 = vadd.f32 %v2764, %v2789
        %s2795 = scalar_lea.vmem %s193, 32 [#allocation2]
        %2796 = vst [vmem:[%s2795] sm:$0xff] %v2791
        %2797 = vst [vmem:[%s2795 + $0x8] sm:$0xff] %v2792
        %2798 = vst [vmem:[%s2795 + $0x10] sm:$0xff] %v2793
        %2799 = vst [vmem:[%s2795 + $0x18] sm:$0xff] %v2794
        %s2800 = sand.u32 %s115, 1
        %s2801 = scalar_lea.sflag [#allocation3], %s2800
        %s2802 = sand.u32 %s115, 1
        %s2803 = smul.addr %s2802, 64
        %s2804 = scalar_lea.vmem [#allocation2], %s2803
        // Predicated region
        $region37: #{tpu_custom_call.1} parent=35 // pred_check
          %p2805 = pneg %p125
        $region38: #{tpu_custom_call.1} parent=35 // pred_check_branch
          %2807 = sbr.rel (%p2805) target = $region40
        $region39: #{tpu_custom_call.1} parent=35 // pred_region
          %s2808 = smul.u32 2, %s18
          %s2810 = ssub.s32 1024, 1024
          %2811 = vsyncadd %s2801, %s2810
          %s2812 = smul.addr %s2808, 4
          %s2813 = smul.addr %s2812, 128
          %s2814 = scalar_lea.hbm %s4, %s2813
          %s2815 = sshll.u32 %s2804, 4
          %s2816 = int_to_ptr.vmem [resolvable:$true] %s2815
          %2821 = dma.vmem_to_hbm [thread:$0]  %s2816, 1024, %s2814, %s2801, 128, 128, 8
        $region40: #{tpu_custom_call.1} parent=35 // pred_fallthru
          _
      $region36: #{tpu_custom_call.1} parent=5 // pred_fallthru
        _
      %p2822 = scmp.le.s32.totalorder 2, %s13
      // Predicated region
      $region41: #{tpu_custom_call.1} parent=5 // pred_check
        %p2823 = pneg %p2822
      $region42: #{tpu_custom_call.1} parent=5 // pred_check_branch
        %2825 = sbr.rel (%p2823) target = $region44
      $region43: #{tpu_custom_call.1} parent=5 // pred_region
        %s2826 = ssub.s32 %s13, 2
        // Predicated region
        $region45: #{tpu_custom_call.1} parent=43 // pred_check
          %p2827 = pneg %p131
        $region46: #{tpu_custom_call.1} parent=43 // pred_check_branch
          %2829 = sbr.rel (%p2827) target = $region48
        $region47: #{tpu_custom_call.1} parent=43 // pred_region
          %s2830 = sand.u32 %s116, 1
          %s2831 = scalar_lea.sflag [#allocation3], %s2830
          %s2832 = sand.u32 %s116, 1
          %s2833 = smul.addr %s2832, 64
          %s2834 = scalar_lea.vmem [#allocation2], %s2833
          %2835 = dma.done %s2831, 1024
        $region48: #{tpu_custom_call.1} parent=43 // pred_fallthru
          _
      $region44: #{tpu_custom_call.1} parent=5 // pred_fallthru
        _
    $region6: #{tpu_custom_call.1} parent=1 // loop_footer
      %s17 = sadd.s32 1, %s13
    $region7: #{tpu_custom_call.1} parent=1 // loop_footer_branch
      %12 = sbr.rel target = $region3
    $region8: #{tpu_custom_call.1} parent=1 // loop_exit
      _
    %2836 = vsyncpa [#allocation3], 1
    %s2837 = scalar_lea.sflag [#allocation3], 1
    %2838 = vsyncpa %s2837, 1

</llo_original>
